<compile_context>
chip_gen: v6e
topology: v6e:2x2x1
jax: 0.10.0
libtpu: 0.0.40
codegen_flags: <defaults>
</compile_context>

<pallas_src>
import functools

import jax
import jax.numpy as jnp
import numpy as np
from jax.experimental import pallas as pl
from jax.experimental.pallas import tpu as pltpu


def _ffn_kernel(stride, compute_dtype,
                x_ref, w1_ref, b1_ref, w2c_ref, b2_ref, o_ref):
    bb, L, D = x_ref.shape
    M = bb * L

    # Fold (bb, L, D) -> (M, D) so the MXU M dimension is large.
    x = x_ref[...].reshape(M, D)

    # w_1: Conv1d(d_model -> d_ff, kernel_size=1) == dense matmul.
    # Weights are already in compute_dtype (pre-cast in the wrapper);
    # bias + ReLU stay in f32 on the VPU.
    h = jnp.dot(x.astype(compute_dtype), w1_ref[...],
                preferred_element_type=jnp.float32) + b1_ref[...]
    h = jnp.maximum(h, 0.0)                       # `self.gelu` is nn.ReLU()
    # TODO(synk): self.dropout (p=0.1) is identity at inference; training-mode
    # dropout is not implemented.

    # w_2: Conv1d(d_ff -> d_model, kernel_size=3, padding=1).
    # One wide matmul against the pre-concatenated (d_ff, 3*D) weight, then
    # shift the narrow (M, D) lane-slices instead of the wide activation.
    p = jnp.dot(h.astype(compute_dtype), w2c_ref[...],
                preferred_element_type=jnp.float32)      # (M, 3*D)
    p0 = p[:, 0 * D:1 * D]    # h @ w2[0]  -> needed shifted down (p0[t-1])
    p1 = p[:, 1 * D:2 * D]    # h @ w2[1]  -> in place
    p2 = p[:, 2 * D:3 * D]    # h @ w2[2]  -> needed shifted up   (p2[t+1])

    # Row id within each batch element of the folded slab.  Masks both the
    # conv zero padding (t==0 / t==L-1) and the batch seams of the slab.
    t = jax.lax.broadcasted_iota(jnp.int32, (M, 1), 0) % L
    y = (jnp.where(t == 0, 0.0, pltpu.roll(p0, shift=1, axis=0))          # p0[t-1]
         + p1
         + jnp.where(t == L - 1, 0.0, pltpu.roll(p2, shift=M - 1, axis=0))  # p2[t+1]
         + b2_ref[...])

    y3 = y.reshape(bb, L, D)
    if stride == 1:
        o_ref[...] = y3.astype(o_ref.dtype)
    else:
        # Conv1d stride: keep only rows t = 0, stride, 2*stride, ... so just
        # L_out rows are written back to HBM.
        # TODO(synk): the fully-optimized version would gather the needed h
        # rows before the w2 matmul to also skip the unused conv FLOPs.
        L_out = o_ref.shape[1]
        rows = [y3[:, i * stride, :] for i in range(L_out)]
        o_ref[...] = jnp.stack(rows, axis=1).astype(o_ref.dtype)


def _pick_block_batch(B, L, target_rows):
    """Largest divisor of B with bb*L <= target_rows; prefers grid >= 2 so
    both v7x TensorCores get work.  (If B is prime this collapses to bb=1,
    which is correct but underfills the MXU -- a known perf cliff.)"""
    divs = [d for d in range(1, B + 1) if B % d == 0]
    fits = [d for d in divs if d * L <= target_rows] or [1]
    proper = [d for d in fits if d < B]
    if proper and B > 1:
        return max(proper)
    return max(fits)


def positionwise_ffn(x, params, *, stride=1, target_rows=1024,
                     compute_dtype=jnp.float32, vmem_limit_bytes=None):
    """Pallas forward of PositionwiseFeedForward.

    params:
      w1: (d_model, d_ff)      == torch w_1.weight[:, :, 0].T
      b1: (1, d_ff)            == torch w_1.bias
      w2: (3, d_ff, d_model)   == torch w_2.weight.permute(2, 1, 0)
      b2: (1, d_model)         == torch w_2.bias

    Use compute_dtype=jnp.bfloat16 for real workloads (MXU fast path, halved
    weight DMA); VPU math stays f32 either way.
    """
    B, L, D = x.shape
    w1, b1, w2, b2 = params["w1"], params["b1"], params["w2"], params["b2"]

    # Conv1d(k=3, padding=1, stride) output length.
    L_out = (L - 1) // stride + 1

    # Pre-concatenate the three k=3 taps into one (d_ff, 3*d_model) operand and
    # pre-cast weights to the MXU compute dtype once (not per grid step).
    w1_c = w1.astype(compute_dtype)
    w2_cat = jnp.concatenate([w2[0], w2[1], w2[2]], axis=1).astype(compute_dtype)
    b1_f = b1.astype(jnp.float32)
    b2_f = b2.astype(jnp.float32)

    bb = _pick_block_batch(B, L, target_rows)
    kernel = functools.partial(_ffn_kernel, stride, compute_dtype)

    y = pl.pallas_call(
        kernel,
        out_shape=jax.ShapeDtypeStruct((B, L_out, D), x.dtype),
        grid_spec=pltpu.PrefetchScalarGridSpec(
            num_scalar_prefetch=0,
            grid=(B // bb,),
            in_specs=[
                pl.BlockSpec((bb, L, D), lambda b: (b, 0, 0)),
                pl.BlockSpec(w1_c.shape, lambda b: (0, 0)),
                pl.BlockSpec(b1_f.shape, lambda b: (0, 0)),
                pl.BlockSpec(w2_cat.shape, lambda b: (0, 0)),
                pl.BlockSpec(b2_f.shape, lambda b: (0, 0)),
            ],
            out_specs=pl.BlockSpec((bb, L_out, D), lambda b: (b, 0, 0)),
        ),
        compiler_params=pltpu.CompilerParams(
            dimension_semantics=("parallel",),
            vmem_limit_bytes=vmem_limit_bytes),
    )(x, w1_c, b1_f, w2_cat, b2_f)
    return y


def ffn_reference(x, params, stride=1):
    """Pure-JAX reference (same math) for correctness checking."""
    L = x.shape[1]
    w1, b1, w2, b2 = params["w1"], params["b1"], params["w2"], params["b2"]
    h = jnp.maximum(x @ w1 + b1, 0.0)                     # (B, L, d_ff)
    hp = jnp.pad(h, ((0, 0), (1, 1), (0, 0)))             # padding=1
    y = (hp[:, 0:L] @ w2[0]
         + hp[:, 1:L + 1] @ w2[1]
         + hp[:, 2:L + 2] @ w2[2]
         + b2)
    return y[:, ::stride, :]


def make_params(key, d_model, d_ff):
    k1, k2, k3, k4 = jax.random.split(key, 4)
    w = lambda k, shape: 0.05 * jax.random.normal(k, shape, dtype=jnp.float32)
    return {
        "w1": w(k1, (d_model, d_ff)),
        "b1": w(k2, (1, d_ff)),
        "w2": w(k3, (3, d_ff, d_model)),
        "b2": w(k4, (1, d_model)),
    }


if __name__ == "__main__":
    # Small but lane-dense shapes: batch=16, frames=16, d_model=128, d_ff=256.
    B, L, D, D_FF = 16, 16, 128, 256
    key = jax.random.PRNGKey(0)
    kx, kp = jax.random.split(key)
    x = jax.random.normal(kx, (B, L, D), dtype=jnp.float32)
    params = make_params(kp, D, D_FF)

    # stride_num[number] == 1 case.
    out = positionwise_ffn(x, params, stride=1)
    out = jax.block_until_ready(out)
    ref = ffn_reference(x, params, stride=1)
    np.testing.assert_allclose(np.asarray(out), np.asarray(ref),
                               rtol=2e-3, atol=2e-3)

    # Strided case (the "Strided" in StridedTransformer), stride=3.
    out_s = positionwise_ffn(x, params, stride=3)
    out_s = jax.block_until_ready(out_s)
    ref_s = ffn_reference(x, params, stride=3)
    np.testing.assert_allclose(np.asarray(out_s), np.asarray(ref_s),
                               rtol=2e-3, atol=2e-3)

    print("KERNEL_OK")
</pallas_src>

<mosaic_0001>
module attributes {stable_mosaic.version = 11 : i64} {
  func.func @_ffn_kernel(%arg0: i32, %arg1: memref<8x16x128xf32, #tpu.memory_space<vmem>>, %arg2: memref<128x256xf32, #tpu.memory_space<vmem>>, %arg3: memref<1x256xf32, #tpu.memory_space<vmem>>, %arg4: memref<256x384xf32, #tpu.memory_space<vmem>>, %arg5: memref<1x128xf32, #tpu.memory_space<vmem>>, %arg6: memref<8x16x128xf32, #tpu.memory_space<vmem>>) attributes {dimension_semantics = [#tpu.dimension_semantics<parallel>], iteration_bounds = array<i64: 2>, scalar_prefetch = 0 : i64, scratch_operands = 0 : i64, tpu.core_type = #tpu.core_type<tc>, window_params = [{transform_indices = @transform_0, window_bounds = array<i64: 8, 16, 128>}, {pipeline_mode = #tpu.pipeline_mode<synchronous>, transform_indices = @transform_1, window_bounds = array<i64: 128, 256>}, {pipeline_mode = #tpu.pipeline_mode<synchronous>, transform_indices = @transform_2, window_bounds = array<i64: 1, 256>}, {pipeline_mode = #tpu.pipeline_mode<synchronous>, transform_indices = @transform_3, window_bounds = array<i64: 256, 384>}, {pipeline_mode = #tpu.pipeline_mode<synchronous>, transform_indices = @transform_4, window_bounds = array<i64: 1, 128>}, {transform_indices = @transform_5, window_bounds = array<i64: 8, 16, 128>}]} {
    %c0 = arith.constant 0 : index
    %c0_0 = arith.constant 0 : index
    %c0_1 = arith.constant 0 : index
    %0 = vector.load %arg1[%c0, %c0_0, %c0_1] : memref<8x16x128xf32, #tpu.memory_space<vmem>>, vector<8x16x128xf32>
    %1 = vector.shape_cast %0 : vector<8x16x128xf32> to vector<128x128xf32>
    %c0_2 = arith.constant 0 : index
    %c0_3 = arith.constant 0 : index
    %2 = vector.load %arg2[%c0_2, %c0_3] : memref<128x256xf32, #tpu.memory_space<vmem>>, vector<128x256xf32>
    %cst = arith.constant dense<0.000000e+00> : vector<128x256xf32>
    %3 = tpu.matmul %1, %2, %cst {dimension_numbers = #tpu.dot_dimension_numbers<[1], [0], [0], [1], [0, 0, 1, 1], [], []>} : vector<128x128xf32>, vector<128x256xf32>, vector<128x256xf32> -> vector<128x256xf32>
    %c0_4 = arith.constant 0 : index
    %c0_5 = arith.constant 0 : index
    %4 = vector.load %arg3[%c0_4, %c0_5] : memref<1x256xf32, #tpu.memory_space<vmem>>, vector<1x256xf32>
    %5 = vector.broadcast %4 : vector<1x256xf32> to vector<128x256xf32>
    %6 = arith.addf %3, %5 : vector<128x256xf32>
    %cst_6 = arith.constant 0.000000e+00 : f32
    %7 = vector.broadcast %cst_6 : f32 to vector<128x256xf32>
    %8 = arith.maximumf %6, %7 : vector<128x256xf32>
    %c0_7 = arith.constant 0 : index
    %c0_8 = arith.constant 0 : index
    %9 = vector.load %arg4[%c0_7, %c0_8] : memref<256x384xf32, #tpu.memory_space<vmem>>, vector<256x384xf32>
    %cst_9 = arith.constant dense<0.000000e+00> : vector<128x384xf32>
    %10 = tpu.matmul %8, %9, %cst_9 {dimension_numbers = #tpu.dot_dimension_numbers<[1], [0], [0], [1], [0, 0, 1, 1], [], []>} : vector<128x256xf32>, vector<256x384xf32>, vector<128x384xf32> -> vector<128x384xf32>
    %11 = vector.extract_strided_slice %10 {offsets = [0, 0], sizes = [128, 128], strides = [1, 1]} : vector<128x384xf32> to vector<128x128xf32>
    %12 = vector.extract_strided_slice %10 {offsets = [0, 128], sizes = [128, 128], strides = [1, 1]} : vector<128x384xf32> to vector<128x128xf32>
    %13 = vector.extract_strided_slice %10 {offsets = [0, 256], sizes = [128, 128], strides = [1, 1]} : vector<128x384xf32> to vector<128x128xf32>
    %14 = tpu.iota {dimensions = array<i32: 0>} : vector<128x1xi32>
    %c16_i32 = arith.constant 16 : i32
    %c0_i32 = arith.constant 0 : i32
    %15 = arith.cmpi eq, %c16_i32, %c0_i32 : i32
    %c1_i32 = arith.constant 1 : i32
    %16 = arith.select %15, %c1_i32, %c16_i32 : i32
    %17 = vector.broadcast %16 : i32 to vector<128x1xi32>
    %18 = arith.remsi %14, %17 : vector<128x1xi32>
    %c0_i32_10 = arith.constant 0 : i32
    %19 = vector.broadcast %c0_i32_10 : i32 to vector<128x1xi32>
    %20 = arith.cmpi ne, %18, %19 : vector<128x1xi32>
    %c0_i32_11 = arith.constant 0 : i32
    %21 = vector.broadcast %c0_i32_11 : i32 to vector<128x1xi32>
    %22 = arith.cmpi slt, %18, %21 : vector<128x1xi32>
    %c0_i32_12 = arith.constant 0 : i32
    %23 = arith.cmpi slt, %16, %c0_i32_12 : i32
    %24 = vector.broadcast %23 : i1 to vector<128x1xi1>
    %25 = vector.broadcast %24 : vector<128x1xi1> to vector<128x1xi1>
    %26 = arith.xori %22, %25 : vector<128x1xi1>
    %27 = arith.andi %26, %20 : vector<128x1xi1>
    %28 = vector.broadcast %16 : i32 to vector<128x1xi32>
    %29 = arith.addi %18, %28 : vector<128x1xi32>
    %30 = arith.select %27, %29, %18 : vector<128x1xi1>, vector<128x1xi32>
    %c0_i32_13 = arith.constant 0 : i32
    %31 = vector.broadcast %c0_i32_13 : i32 to vector<128x1xi32>
    %32 = arith.cmpi eq, %30, %31 : vector<128x1xi32>
    %c1_i32_14 = arith.constant 1 : i32
    %33 = tpu.dynamic_rotate %11 by %c1_i32_14 dim 0 : vector<128x128xf32>, i32 -> vector<128x128xf32>
    %cst_15 = arith.constant 0.000000e+00 : f32
    %34 = vector.shape_cast %32 : vector<128x1xi1> to vector<128x1xi1>
    %35 = vector.broadcast %34 : vector<128x1xi1> to vector<128x128xi1>
    %36 = vector.broadcast %cst_15 : f32 to vector<128x128xf32>
    %37 = arith.select %35, %36, %33 : vector<128x128xi1>, vector<128x128xf32>
    %38 = arith.addf %37, %12 : vector<128x128xf32>
    %c15_i32 = arith.constant 15 : i32
    %39 = vector.broadcast %c15_i32 : i32 to vector<128x1xi32>
    %40 = arith.cmpi eq, %30, %39 : vector<128x1xi32>
    %c127_i32 = arith.constant 127 : i32
    %41 = tpu.dynamic_rotate %13 by %c127_i32 dim 0 : vector<128x128xf32>, i32 -> vector<128x128xf32>
    %cst_16 = arith.constant 0.000000e+00 : f32
    %42 = vector.shape_cast %40 : vector<128x1xi1> to vector<128x1xi1>
    %43 = vector.broadcast %42 : vector<128x1xi1> to vector<128x128xi1>
    %44 = vector.broadcast %cst_16 : f32 to vector<128x128xf32>
    %45 = arith.select %43, %44, %41 : vector<128x128xi1>, vector<128x128xf32>
    %46 = arith.addf %38, %45 : vector<128x128xf32>
    %c0_17 = arith.constant 0 : index
    %c0_18 = arith.constant 0 : index
    %47 = vector.load %arg5[%c0_17, %c0_18] : memref<1x128xf32, #tpu.memory_space<vmem>>, vector<1x128xf32>
    %48 = vector.broadcast %47 : vector<1x128xf32> to vector<128x128xf32>
    %49 = arith.addf %46, %48 : vector<128x128xf32>
    %50 = vector.shape_cast %49 : vector<128x128xf32> to vector<8x16x128xf32>
    %c0_19 = arith.constant 0 : index
    %c0_20 = arith.constant 0 : index
    %c0_21 = arith.constant 0 : index
    %51 = vector.load %arg6[%c0_19, %c0_20, %c0_21] : memref<8x16x128xf32, #tpu.memory_space<vmem>>, vector<8x16x128xf32>
    tpu.vector_store %arg6[%c0_19, %c0_20, %c0_21], %50 {strides = array<i32>} : memref<8x16x128xf32, #tpu.memory_space<vmem>>, vector<8x16x128xf32>,
    return
  }
  func.func @transform_0(%arg0: i32) -> (i32, i32, i32) {
    %c0_i32 = arith.constant 0 : i32
    %c0_i32_0 = arith.constant 0 : i32
    %c0_i32_1 = arith.constant 0 : i32
    return %arg0, %c0_i32, %c0_i32_0 : i32, i32, i32
  }
  func.func @transform_1(%arg0: i32) -> (i32, i32) {
    %c0_i32 = arith.constant 0 : i32
    %c0_i32_0 = arith.constant 0 : i32
    %c0_i32_1 = arith.constant 0 : i32
    return %c0_i32, %c0_i32_0 : i32, i32
  }
  func.func @transform_2(%arg0: i32) -> (i32, i32) {
    %c0_i32 = arith.constant 0 : i32
    %c0_i32_0 = arith.constant 0 : i32
    %c0_i32_1 = arith.constant 0 : i32
    return %c0_i32, %c0_i32_0 : i32, i32
  }
  func.func @transform_3(%arg0: i32) -> (i32, i32) {
    %c0_i32 = arith.constant 0 : i32
    %c0_i32_0 = arith.constant 0 : i32
    %c0_i32_1 = arith.constant 0 : i32
    return %c0_i32, %c0_i32_0 : i32, i32
  }
  func.func @transform_4(%arg0: i32) -> (i32, i32) {
    %c0_i32 = arith.constant 0 : i32
    %c0_i32_0 = arith.constant 0 : i32
    %c0_i32_1 = arith.constant 0 : i32
    return %c0_i32, %c0_i32_0 : i32, i32
  }
  func.func @transform_5(%arg0: i32) -> (i32, i32, i32) {
    %c0_i32 = arith.constant 0 : i32
    %c0_i32_0 = arith.constant 0 : i32
    %c0_i32_1 = arith.constant 0 : i32
    return %arg0, %c0_i32, %c0_i32_0 : i32, i32, i32
  }
}

</mosaic_0001>

<llo_original>
// kernel: tpu_custom_call.1
$region0: #{tpu_custom_call.1}
  #allocation0 [shape = 'u32[]', space=smem, size = 0x4, offset = 0x4, fixed_abs, tag = 'smem constant byte address 0x4 - core index']
  #allocation1 [shape = 'u32[144,128]{1,0:T(1,128)}', space=vmem, size = 0x12000, scoped, tag = 'internal scratch']
  %s0 = inlined_call_operand.hbm [shape: f32[16,16,128], index: 0, kind: input, shape index: {}]
  %s1 = inlined_call_operand.hbm [shape: f32[128,256], index: 1, kind: input, shape index: {}]
  %s2 = inlined_call_operand.vmem [shape: f32[1,256], index: 2, kind: input, shape index: {}]
  %s3 = inlined_call_operand.hbm [shape: f32[256,384], index: 3, kind: input, shape index: {}]
  %s4 = inlined_call_operand.vmem [shape: f32[1,128], index: 4, kind: input, shape index: {}]
  %s5 = inlined_call_operand.hbm [shape: f32[16,16,128], index: 5, kind: output, shape index: {}]
  %s6 = sld [smem:[#allocation0]]
  $region65: #{tpu_custom_call.1} parent=0
    _
  %s8 = ssub.s32 1, %s6
  %s9 = scalar_select 0, %s8, %s6
  $region1: #{tpu_custom_call.1} parent=0
    #allocation2 [shape = 'u8[131072]{0}', space=vmem, size = 0x20000, scoped, tag = 'input window, operand 0']
    #allocation3 [shape = 's32[2]{0}', space=sflag, size = 0x8, scoped, tag = 'scoped memory for tpu_custom_call.1']
    #allocation4 [shape = 's32[2]{0}', space=sflag, size = 0x8, scoped, tag = 'scoped memory for tpu_custom_call.1']
    #allocation5 [shape = 'u8[131072]{0}', space=vmem, size = 0x20000, scoped, tag = 'input window, operand 1, single buffered']
    #allocation6 [shape = 's32[1]{0}', space=sflag, size = 0x4, scoped, tag = 'scoped memory for tpu_custom_call.1']
    #allocation7 [shape = 'u8[393216]{0}', space=vmem, size = 0x60000, scoped, tag = 'input window, operand 3, single buffered']
    #allocation8 [shape = 'u8[131072]{0}', space=vmem, size = 0x20000, scoped, tag = 'output window, operand 0']
    %10 = vsyncpa [#allocation3], 0
    %s11 = scalar_lea.sflag [#allocation3], 1
    %12 = vsyncpa %s11, 0
    %13 = vsyncpa [#allocation6], 0
    %14 = vsyncpa [#allocation4], 0
    %s15 = scalar_lea.sflag [#allocation4], 1
    %16 = vsyncpa %s15, 0
    loop: start=0, step=1, limit=4
    $region2: #{tpu_custom_call.1} parent=1 // loop_pre_header
      _
    $region3: #{tpu_custom_call.1} parent=1 // loop_header
      %s18 = sphi 0, %s22
      %p19 = scmp.ge.s32.totalorder %s18, 4
      %s28 = sphi 0, %s30
      %s31 = sphi 0, %s28
      %s32 = sphi 0, %s31
      %s48 = sphi 0, %s32
      %s52 = sphi 0, %s52
      %s54 = sphi 0, %s52
      %s55 = sphi 0, %s54
      %s69 = sphi 0, %s55
      %s73 = sphi 0, %s73
      %s75 = sphi 0, %s73
      %s76 = sphi 0, %s75
      %s90 = sphi 0, %s76
      %s94 = sphi 0, %s94
      %s96 = sphi 0, %s94
      %s97 = sphi 0, %s96
      %s111 = sphi 0, %s97
      %s115 = sphi 0, %s115
      %s117 = sphi 0, %s115
      %s118 = sphi 0, %s117
      %s132 = sphi 0, %s118
      %s138 = sphi 0, %s140
      %s141 = sphi 0, %s138
      %s142 = sphi 0, %s141
      %s158 = sphi 0, %s142
    $region4: #{tpu_custom_call.1} parent=1 // loop_header_branch
      %21 = sbr.rel (%p19) target = $region8
    $region5: #{tpu_custom_call.1} parent=1 // loop_body
      %s23 = ssub.s32 %s18, 1
      %s24 = ssub.s32 %s18, 2
      %s25 = sadd.s32 %s18, 1
      %s26 = ssub.s32 %s18, %s25
      %p27 = scmp.eq.s32.totalorder %s26, 0
      %s29 = sadd.s32 %s28, 1
      %s30 = scalar_select %p27, %s28, %s29
      %p33 = pneg %p27
      %p34 = scmp.eq.s32.totalorder %s18, 1
      %p35 = por %p33, %p34
      %p36 = scmp.ne.s32.totalorder %s28, %s31
      %p37 = scmp.eq.s32.totalorder %s18, 0
      %p38 = por %p36, %p37
      %p39 = scmp.ne.s32.totalorder %s28, %s31
      %p40 = scmp.eq.s32.totalorder %s23, 1
      %p41 = por %p39, %p40
      %p42 = scmp.ne.s32.totalorder %s31, %s32
      %p43 = scmp.eq.s32.totalorder %s23, 0
      %p44 = por %p42, %p43
      %p45 = scmp.ne.s32.totalorder %s31, %s32
      %p46 = scmp.eq.s32.totalorder %s24, 1
      %p47 = por %p45, %p46
      %p49 = scmp.ne.s32.totalorder %s32, %s48
      %p50 = scmp.eq.s32.totalorder %s24, 0
      %p51 = por %p49, %p50
      %s53 = sadd.s32 %s52, 1
      %p56 = scmp.eq.s32.totalorder %s18, 1
      %p57 = scmp.ne.s32.totalorder %s52, %s54
      %p58 = scmp.eq.s32.totalorder %s18, 0
      %p59 = por %p57, %p58
      %p60 = scmp.ne.s32.totalorder %s52, %s54
      %p61 = scmp.eq.s32.totalorder %s23, 1
      %p62 = por %p60, %p61
      %p63 = scmp.ne.s32.totalorder %s54, %s55
      %p64 = scmp.eq.s32.totalorder %s23, 0
      %p65 = por %p63, %p64
      %p66 = scmp.ne.s32.totalorder %s54, %s55
      %p67 = scmp.eq.s32.totalorder %s24, 1
      %p68 = por %p66, %p67
      %p70 = scmp.ne.s32.totalorder %s55, %s69
      %p71 = scmp.eq.s32.totalorder %s24, 0
      %p72 = por %p70, %p71
      %s74 = sadd.s32 %s73, 1
      %p77 = scmp.eq.s32.totalorder %s18, 1
      %p78 = scmp.ne.s32.totalorder %s73, %s75
      %p79 = scmp.eq.s32.totalorder %s18, 0
      %p80 = por %p78, %p79
      %p81 = scmp.ne.s32.totalorder %s73, %s75
      %p82 = scmp.eq.s32.totalorder %s23, 1
      %p83 = por %p81, %p82
      %p84 = scmp.ne.s32.totalorder %s75, %s76
      %p85 = scmp.eq.s32.totalorder %s23, 0
      %p86 = por %p84, %p85
      %p87 = scmp.ne.s32.totalorder %s75, %s76
      %p88 = scmp.eq.s32.totalorder %s24, 1
      %p89 = por %p87, %p88
      %p91 = scmp.ne.s32.totalorder %s76, %s90
      %p92 = scmp.eq.s32.totalorder %s24, 0
      %p93 = por %p91, %p92
      %s95 = sadd.s32 %s94, 1
      %p98 = scmp.eq.s32.totalorder %s18, 1
      %p99 = scmp.ne.s32.totalorder %s94, %s96
      %p100 = scmp.eq.s32.totalorder %s18, 0
      %p101 = por %p99, %p100
      %p102 = scmp.ne.s32.totalorder %s94, %s96
      %p103 = scmp.eq.s32.totalorder %s23, 1
      %p104 = por %p102, %p103
      %p105 = scmp.ne.s32.totalorder %s96, %s97
      %p106 = scmp.eq.s32.totalorder %s23, 0
      %p107 = por %p105, %p106
      %p108 = scmp.ne.s32.totalorder %s96, %s97
      %p109 = scmp.eq.s32.totalorder %s24, 1
      %p110 = por %p108, %p109
      %p112 = scmp.ne.s32.totalorder %s97, %s111
      %p113 = scmp.eq.s32.totalorder %s24, 0
      %p114 = por %p112, %p113
      %s116 = sadd.s32 %s115, 1
      %p119 = scmp.eq.s32.totalorder %s18, 1
      %p120 = scmp.ne.s32.totalorder %s115, %s117
      %p121 = scmp.eq.s32.totalorder %s18, 0
      %p122 = por %p120, %p121
      %p123 = scmp.ne.s32.totalorder %s115, %s117
      %p124 = scmp.eq.s32.totalorder %s23, 1
      %p125 = por %p123, %p124
      %p126 = scmp.ne.s32.totalorder %s117, %s118
      %p127 = scmp.eq.s32.totalorder %s23, 0
      %p128 = por %p126, %p127
      %p129 = scmp.ne.s32.totalorder %s117, %s118
      %p130 = scmp.eq.s32.totalorder %s24, 1
      %p131 = por %p129, %p130
      %p133 = scmp.ne.s32.totalorder %s118, %s132
      %p134 = scmp.eq.s32.totalorder %s24, 0
      %p135 = por %p133, %p134
      %s136 = ssub.s32 %s18, %s25
      %p137 = scmp.eq.s32.totalorder %s136, 0
      %s139 = sadd.s32 %s138, 1
      %s140 = scalar_select %p137, %s138, %s139
      %p143 = pneg %p137
      %p144 = scmp.eq.s32.totalorder %s18, 1
      %p145 = por %p143, %p144
      %p146 = scmp.ne.s32.totalorder %s138, %s141
      %p147 = scmp.eq.s32.totalorder %s18, 0
      %p148 = por %p146, %p147
      %p149 = scmp.ne.s32.totalorder %s138, %s141
      %p150 = scmp.eq.s32.totalorder %s23, 1
      %p151 = por %p149, %p150
      %p152 = scmp.ne.s32.totalorder %s141, %s142
      %p153 = scmp.eq.s32.totalorder %s23, 0
      %p154 = por %p152, %p153
      %p155 = scmp.ne.s32.totalorder %s141, %s142
      %p156 = scmp.eq.s32.totalorder %s24, 1
      %p157 = por %p155, %p156
      %p159 = scmp.ne.s32.totalorder %s142, %s158
      %p160 = scmp.eq.s32.totalorder %s24, 0
      %p161 = por %p159, %p160
      %p162 = scmp.le.s32.totalorder 1, %s18
      %p163 = scmp.lt.s32.totalorder %s18, 3
      %p164 = pnand %p162, %p163
      %p165 = pneg %p164
      // Predicated region
      $region9: #{tpu_custom_call.1} parent=5 // pred_check
        _
      $region10: #{tpu_custom_call.1} parent=5 // pred_check_branch
        %167 = sbr.rel (%p164) target = $region12
      $region11: #{tpu_custom_call.1} parent=5 // pred_region
        %s168 = ssub.s32 %s18, 1
        // Predicated region
        $region13: #{tpu_custom_call.1} parent=11 // pred_check
          %p169 = pneg %p65
        $region14: #{tpu_custom_call.1} parent=11 // pred_check_branch
          %171 = sbr.rel (%p169) target = $region16
        $region15: #{tpu_custom_call.1} parent=11 // pred_region
          %s173 = ssub.s32 4096, 4096
          %174 = vsyncadd [#allocation6], %s173
          %s175 = sshll.u32 [#allocation5], 4
          %s176 = int_to_ptr.vmem [resolvable:$true] %s175
          %181 = dma.hbm_to_vmem [thread:$0]  %s1, 4096, %s176, [#allocation6], 256, 256, 16
        $region16: #{tpu_custom_call.1} parent=11 // pred_fallthru
          _
        // Predicated region
        $region17: #{tpu_custom_call.1} parent=11 // pred_check
          %p182 = pneg %p86
        $region18: #{tpu_custom_call.1} parent=11 // pred_check_branch
          %184 = sbr.rel (%p182) target = $region20
        $region19: #{tpu_custom_call.1} parent=11 // pred_region
          _
        $region20: #{tpu_custom_call.1} parent=11 // pred_fallthru
          _
        // Predicated region
        $region21: #{tpu_custom_call.1} parent=11 // pred_check
          %p185 = pneg %p107
        $region22: #{tpu_custom_call.1} parent=11 // pred_check_branch
          %187 = sbr.rel (%p185) target = $region24
        $region23: #{tpu_custom_call.1} parent=11 // pred_region
          %s189 = ssub.s32 12288, 12288
          %190 = vsyncadd [#allocation6], %s189
          %s191 = sshll.u32 [#allocation7], 4
          %s192 = int_to_ptr.vmem [resolvable:$true] %s191
          %197 = dma.hbm_to_vmem [thread:$0]  %s3, 12288, %s192, [#allocation6], 384, 384, 24
        $region24: #{tpu_custom_call.1} parent=11 // pred_fallthru
          _
        // Predicated region
        $region25: #{tpu_custom_call.1} parent=11 // pred_check
          %p198 = pneg %p128
        $region26: #{tpu_custom_call.1} parent=11 // pred_check_branch
          %200 = sbr.rel (%p198) target = $region28
        $region27: #{tpu_custom_call.1} parent=11 // pred_region
          _
        $region28: #{tpu_custom_call.1} parent=11 // pred_fallthru
          _
      $region12: #{tpu_custom_call.1} parent=5 // pred_fallthru
        _
      %p201 = scmp.lt.s32.totalorder %s18, 2
      // Predicated region
      $region29: #{tpu_custom_call.1} parent=5 // pred_check
        %p202 = pneg %p201
      $region30: #{tpu_custom_call.1} parent=5 // pred_check_branch
        %204 = sbr.rel (%p202) target = $region32
      $region31: #{tpu_custom_call.1} parent=5 // pred_region
        // Predicated region
        $region33: #{tpu_custom_call.1} parent=31 // pred_check
          %p205 = pneg %p38
        $region34: #{tpu_custom_call.1} parent=31 // pred_check_branch
          %207 = sbr.rel (%p205) target = $region36
        $region35: #{tpu_custom_call.1} parent=31 // pred_region
          %s208 = sand.u32 %s28, 1
          %s209 = scalar_lea.sflag [#allocation3], %s208
          %s210 = sand.u32 %s28, 1
          %s211 = smul.addr %s210, 128
          %s212 = scalar_lea.vmem [#allocation2], %s211
          %s213 = smul.u32 8, %s18
          %s215 = ssub.s32 2048, 2048
          %216 = vsyncadd %s209, %s215
          %s217 = smul.addr %s213, 2
          %s218 = smul.addr %s217, 128
          %s219 = scalar_lea.hbm %s0, %s218
          %s220 = sshll.u32 %s212, 4
          %s221 = int_to_ptr.vmem [resolvable:$true] %s220
          %226 = dma.hbm_to_vmem [thread:$0]  %s219, 2048, %s221, %s209, 128, 128, 8
        $region36: #{tpu_custom_call.1} parent=31 // pred_fallthru
          _
      $region32: #{tpu_custom_call.1} parent=5 // pred_fallthru
        _
      %p227 = scmp.le.s32.totalorder 1, %s18
      %p228 = scmp.lt.s32.totalorder %s18, 3
      %p229 = pnand %p227, %p228
      %p230 = pneg %p229
      // Predicated region
      $region37: #{tpu_custom_call.1} parent=5 // pred_check
        _
      $region38: #{tpu_custom_call.1} parent=5 // pred_check_branch
        %232 = sbr.rel (%p229) target = $region40
      $region39: #{tpu_custom_call.1} parent=5 // pred_region
        %s233 = ssub.s32 %s18, 1
        %s234 = sand.u32 %s31, 1
        %s235 = scalar_lea.sflag [#allocation3], %s234
        %s236 = sand.u32 %s31, 1
        %s237 = smul.addr %s236, 128
        %s238 = scalar_lea.vmem [#allocation2], %s237
        // Predicated region
        $region41: #{tpu_custom_call.1} parent=39 // pred_check
          %p239 = pneg %p44
        $region42: #{tpu_custom_call.1} parent=39 // pred_check_branch
          %241 = sbr.rel (%p239) target = $region44
        $region43: #{tpu_custom_call.1} parent=39 // pred_region
          %242 = dma.done %s235, 2048
        $region44: #{tpu_custom_call.1} parent=39 // pred_fallthru
          _
        // Predicated region
        $region45: #{tpu_custom_call.1} parent=39 // pred_check
          %p243 = pneg %p65
        $region46: #{tpu_custom_call.1} parent=39 // pred_check_branch
          %245 = sbr.rel (%p243) target = $region48
        $region47: #{tpu_custom_call.1} parent=39 // pred_region
          %246 = dma.done [#allocation6], 4096
        $region48: #{tpu_custom_call.1} parent=39 // pred_fallthru
          _
        // Predicated region
        $region49: #{tpu_custom_call.1} parent=39 // pred_check
          %p247 = pneg %p107
        $region50: #{tpu_custom_call.1} parent=39 // pred_check_branch
          %249 = sbr.rel (%p247) target = $region52
        $region51: #{tpu_custom_call.1} parent=39 // pred_region
          %250 = dma.done [#allocation6], 12288
        $region52: #{tpu_custom_call.1} parent=39 // pred_fallthru
          _
        %s251 = sand.u32 %s31, 1
        %s252 = scalar_lea.sflag [#allocation3], %s251
        %s253 = sand.u32 %s31, 1
        %s254 = smul.addr %s253, 128
        %s255 = scalar_lea.vmem [#allocation2], %s254
        %p256 = pneg %p44
        %p257 = pneg %p41
        %p258 = pneg %p65
        %p259 = pneg %p62
        %p260 = pneg %p86
        %p261 = pneg %p83
        %p262 = pneg %p107
        %p263 = pneg %p104
        %p264 = pneg %p128
        %p265 = pneg %p125
        %p266 = pneg %p154
        %p267 = pneg %p151
        %s268 = sand.u32 %s141, 1
        %s269 = scalar_lea.sflag [#allocation4], %s268
        %s270 = sand.u32 %s141, 1
        %s271 = smul.addr %s270, 128
        %s272 = scalar_lea.vmem [#allocation8], %s271
        %s273 = smul.u32 8, %s23
        %s274 = smul.u32 8, %s23
        %v275 = vld [vmem:[%s238] sm:$0xff]
        %v276 = vld [vmem:[%s238 + $0x8] sm:$0xff]
        %v277 = vld [vmem:[%s238 + $0x10] sm:$0xff]
        %v278 = vld [vmem:[%s238 + $0x18] sm:$0xff]
        %v279 = vld [vmem:[%s238 + $0x20] sm:$0xff]
        %v280 = vld [vmem:[%s238 + $0x28] sm:$0xff]
        %v281 = vld [vmem:[%s238 + $0x30] sm:$0xff]
        %v282 = vld [vmem:[%s238 + $0x38] sm:$0xff]
        %v283 = vld [vmem:[%s238 + $0x40] sm:$0xff]
        %v284 = vld [vmem:[%s238 + $0x48] sm:$0xff]
        %v285 = vld [vmem:[%s238 + $0x50] sm:$0xff]
        %v286 = vld [vmem:[%s238 + $0x58] sm:$0xff]
        %v287 = vld [vmem:[%s238 + $0x60] sm:$0xff]
        %v288 = vld [vmem:[%s238 + $0x68] sm:$0xff]
        %v289 = vld [vmem:[%s238 + $0x70] sm:$0xff]
        %v290 = vld [vmem:[%s238 + $0x78] sm:$0xff]
        %v291 = vld [vmem:[#allocation5] sm:$0xff]
        %v292 = vld [vmem:[#allocation5 + $0x8] sm:$0xff]
        %v293 = vld [vmem:[#allocation5 + $0x10] sm:$0xff]
        %v294 = vld [vmem:[#allocation5 + $0x18] sm:$0xff]
        %v295 = vld [vmem:[#allocation5 + $0x20] sm:$0xff]
        %v296 = vld [vmem:[#allocation5 + $0x28] sm:$0xff]
        %v297 = vld [vmem:[#allocation5 + $0x30] sm:$0xff]
        %v298 = vld [vmem:[#allocation5 + $0x38] sm:$0xff]
        %v299 = vld [vmem:[#allocation5 + $0x40] sm:$0xff]
        %v300 = vld [vmem:[#allocation5 + $0x48] sm:$0xff]
        %v301 = vld [vmem:[#allocation5 + $0x50] sm:$0xff]
        %v302 = vld [vmem:[#allocation5 + $0x58] sm:$0xff]
        %v303 = vld [vmem:[#allocation5 + $0x60] sm:$0xff]
        %v304 = vld [vmem:[#allocation5 + $0x68] sm:$0xff]
        %v305 = vld [vmem:[#allocation5 + $0x70] sm:$0xff]
        %v306 = vld [vmem:[#allocation5 + $0x78] sm:$0xff]
        %v307 = vld [vmem:[#allocation5 + $0x80] sm:$0xff]
        %v308 = vld [vmem:[#allocation5 + $0x88] sm:$0xff]
        %v309 = vld [vmem:[#allocation5 + $0x90] sm:$0xff]
        %v310 = vld [vmem:[#allocation5 + $0x98] sm:$0xff]
        %v311 = vld [vmem:[#allocation5 + $0xa0] sm:$0xff]
        %v312 = vld [vmem:[#allocation5 + $0xa8] sm:$0xff]
        %v313 = vld [vmem:[#allocation5 + $0xb0] sm:$0xff]
        %v314 = vld [vmem:[#allocation5 + $0xb8] sm:$0xff]
        %v315 = vld [vmem:[#allocation5 + $0xc0] sm:$0xff]
        %v316 = vld [vmem:[#allocation5 + $0xc8] sm:$0xff]
        %v317 = vld [vmem:[#allocation5 + $0xd0] sm:$0xff]
        %v318 = vld [vmem:[#allocation5 + $0xd8] sm:$0xff]
        %v319 = vld [vmem:[#allocation5 + $0xe0] sm:$0xff]
        %v320 = vld [vmem:[#allocation5 + $0xe8] sm:$0xff]
        %v321 = vld [vmem:[#allocation5 + $0xf0] sm:$0xff]
        %v322 = vld [vmem:[#allocation5 + $0xf8] sm:$0xff]
        %v323 = vld [vmem:[%s2] sm:$0x3]
        %v325 = vlaneseq
        %v326 = vshrl.u32 %v325, 7
        %v327 = vsub.s32 0, %v326
        %v328 = vrot.slane %v323, %v327
        %v329 = vlaneseq
        %v330 = vshrl.u32 %v329, 7
        %v331 = vsub.s32 1, %v330
        %v332 = vrot.slane %v323, %v331
        %335 = vmatprep.subr.mxu0 %v322
        %336 = vmatpush1.msra.mxu0 %v321
        %337 = vmatprep.subr.mxu0 %v320
        %338 = vmatpush1.msra.mxu0 %v319
        %339 = vmatprep.subr.mxu0 %v318
        %340 = vmatpush1.msra.mxu0 %v317
        %341 = vmatprep.subr.mxu0 %v316
        %342 = vmatpush1.msra.mxu0 %v315
        %343 = vmatprep.subr.mxu0 %v314
        %344 = vmatpush1.msra.mxu0 %v313
        %345 = vmatprep.subr.mxu0 %v312
        %346 = vmatpush1.msra.mxu0 %v311
        %347 = vmatprep.subr.mxu0 %v310
        %348 = vmatpush1.msra.mxu0 %v309
        %349 = vmatprep.subr.mxu0 %v308
        %350 = vmatpush1.msra.mxu0 %v307
        %351 = vmatprep.subr.mxu0 %v306
        %352 = vmatpush1.msra.mxu0 %v305
        %353 = vmatprep.subr.mxu0 %v304
        %354 = vmatpush1.msra.mxu0 %v303
        %355 = vmatprep.subr.mxu0 %v302
        %356 = vmatpush1.msra.mxu0 %v301
        %357 = vmatprep.subr.mxu0 %v300
        %358 = vmatpush1.msra.mxu0 %v299
        %359 = vmatprep.subr.mxu0 %v298
        %360 = vmatpush1.msra.mxu0 %v297
        %361 = vmatprep.subr.mxu0 %v296
        %362 = vmatpush1.msra.mxu0 %v295
        %363 = vmatprep.subr.mxu0 %v294
        %364 = vmatpush1.msra.mxu0 %v293
        %365 = vmatprep.subr.mxu0 %v292
        %366 = vmatpush1.msra.mxu0 %v291
        %367 = vmatprep.subr.mxu0 0.0
        %368 = vmatpush2.msra.mxu0 0.0
        %369 = vmatprep.subr.mxu0 0.0
        %370 = vmatpush2.msra.mxu0 0.0
        %371 = vmatprep.subr.mxu0 0.0
        %372 = vmatpush2.msra.mxu0 0.0
        %373 = vmatprep.subr.mxu0 0.0
        %374 = vmatpush2.msra.mxu0 0.0
        %375 = vmatprep.subr.mxu0 0.0
        %376 = vmatpush2.msra.mxu0 0.0
        %377 = vmatprep.subr.mxu0 0.0
        %378 = vmatpush2.msra.mxu0 0.0
        %379 = vmatprep.subr.mxu0 0.0
        %380 = vmatpush2.msra.mxu0 0.0
        %381 = vmatprep.subr.mxu0 0.0
        %382 = vmatpush2.msra.mxu0 0.0
        %383 = vmatprep.subr.mxu0 0.0
        %384 = vmatpush2.msra.mxu0 0.0
        %385 = vmatprep.subr.mxu0 0.0
        %386 = vmatpush2.msra.mxu0 0.0
        %387 = vmatprep.subr.mxu0 0.0
        %388 = vmatpush2.msra.mxu0 0.0
        %389 = vmatprep.subr.mxu0 0.0
        %390 = vmatpush2.msra.mxu0 0.0
        %391 = vmatprep.subr.mxu0 0.0
        %392 = vmatpush2.msra.mxu0 0.0
        %393 = vmatprep.subr.mxu0 0.0
        %394 = vmatpush2.msra.mxu0 0.0
        %395 = vmatprep.subr.mxu0 0.0
        %396 = vmatpush2.msra.mxu0 0.0
        %397 = vmatprep.subr.mxu0 0.0
        %398 = vmatpush2.msra.mxu0 0.0
        %399 = vmatprep.mubr.f32.mxu0 0.0
        %400 = vmatmul.mubr.f32.gmra.mxu0 %v275
        %v401 = vpop.f32.mrf.mxu0
        %v402 = vadd.f32 %v328, %v401
        %v403 = vpop.f32.mrf.mxu0
        %v404 = vadd.f32 %v332, %v403
        %405 = vmatprep.mubr.f32.mxu0 0.0
        %406 = vmatmul.mubr.f32.gmra.mxu0 %v276
        %v407 = vpop.f32.mrf.mxu0
        %v408 = vadd.f32 %v328, %v407
        %v409 = vpop.f32.mrf.mxu0
        %v410 = vadd.f32 %v332, %v409
        %411 = vmatprep.mubr.f32.mxu0 0.0
        %412 = vmatmul.mubr.f32.gmra.mxu0 %v277
        %v413 = vpop.f32.mrf.mxu0
        %v414 = vadd.f32 %v328, %v413
        %v415 = vpop.f32.mrf.mxu0
        %v416 = vadd.f32 %v332, %v415
        %417 = vmatprep.mubr.f32.mxu0 0.0
        %418 = vmatmul.mubr.f32.gmra.mxu0 %v278
        %v419 = vpop.f32.mrf.mxu0
        %v420 = vadd.f32 %v328, %v419
        %v421 = vpop.f32.mrf.mxu0
        %v422 = vadd.f32 %v332, %v421
        %423 = vmatprep.mubr.f32.mxu0 0.0
        %424 = vmatmul.mubr.f32.gmra.mxu0 %v279
        %v425 = vpop.f32.mrf.mxu0
        %v426 = vadd.f32 %v328, %v425
        %v427 = vpop.f32.mrf.mxu0
        %v428 = vadd.f32 %v332, %v427
        %429 = vmatprep.mubr.f32.mxu0 0.0
        %430 = vmatmul.mubr.f32.gmra.mxu0 %v280
        %v431 = vpop.f32.mrf.mxu0
        %v432 = vadd.f32 %v328, %v431
        %v433 = vpop.f32.mrf.mxu0
        %v434 = vadd.f32 %v332, %v433
        %435 = vmatprep.mubr.f32.mxu0 0.0
        %436 = vmatmul.mubr.f32.gmra.mxu0 %v281
        %v437 = vpop.f32.mrf.mxu0
        %v438 = vadd.f32 %v328, %v437
        %v439 = vpop.f32.mrf.mxu0
        %v440 = vadd.f32 %v332, %v439
        %441 = vmatprep.mubr.f32.mxu0 0.0
        %442 = vmatmul.mubr.f32.gmra.mxu0 %v282
        %v443 = vpop.f32.mrf.mxu0
        %v444 = vadd.f32 %v328, %v443
        %v445 = vpop.f32.mrf.mxu0
        %v446 = vadd.f32 %v332, %v445
        %447 = vmatprep.mubr.f32.mxu0 0.0
        %448 = vmatmul.mubr.f32.gmra.mxu0 %v283
        %v449 = vpop.f32.mrf.mxu0
        %v450 = vadd.f32 %v328, %v449
        %v451 = vpop.f32.mrf.mxu0
        %v452 = vadd.f32 %v332, %v451
        %453 = vmatprep.mubr.f32.mxu0 0.0
        %454 = vmatmul.mubr.f32.gmra.mxu0 %v284
        %v455 = vpop.f32.mrf.mxu0
        %v456 = vadd.f32 %v328, %v455
        %v457 = vpop.f32.mrf.mxu0
        %v458 = vadd.f32 %v332, %v457
        %459 = vmatprep.mubr.f32.mxu0 0.0
        %460 = vmatmul.mubr.f32.gmra.mxu0 %v285
        %v461 = vpop.f32.mrf.mxu0
        %v462 = vadd.f32 %v328, %v461
        %v463 = vpop.f32.mrf.mxu0
        %v464 = vadd.f32 %v332, %v463
        %465 = vmatprep.mubr.f32.mxu0 0.0
        %466 = vmatmul.mubr.f32.gmra.mxu0 %v286
        %v467 = vpop.f32.mrf.mxu0
        %v468 = vadd.f32 %v328, %v467
        %v469 = vpop.f32.mrf.mxu0
        %v470 = vadd.f32 %v332, %v469
        %471 = vmatprep.mubr.f32.mxu0 0.0
        %472 = vmatmul.mubr.f32.gmra.mxu0 %v287
        %v473 = vpop.f32.mrf.mxu0
        %v474 = vadd.f32 %v328, %v473
        %v475 = vpop.f32.mrf.mxu0
        %v476 = vadd.f32 %v332, %v475
        %477 = vmatprep.mubr.f32.mxu0 0.0
        %478 = vmatmul.mubr.f32.gmra.mxu0 %v288
        %v479 = vpop.f32.mrf.mxu0
        %v480 = vadd.f32 %v328, %v479
        %v481 = vpop.f32.mrf.mxu0
        %v482 = vadd.f32 %v332, %v481
        %483 = vmatprep.mubr.f32.mxu0 0.0
        %484 = vmatmul.mubr.f32.gmra.mxu0 %v289
        %v485 = vpop.f32.mrf.mxu0
        %v486 = vadd.f32 %v328, %v485
        %v487 = vpop.f32.mrf.mxu0
        %v488 = vadd.f32 %v332, %v487
        %489 = vmatprep.mubr.f32.mxu0 0.0
        %490 = vmatmul.mubr.f32.gmra.mxu0 %v290
        %v491 = vpop.f32.mrf.mxu0
        %v492 = vadd.f32 %v328, %v491
        %v493 = vpop.f32.mrf.mxu0
        %v494 = vadd.f32 %v332, %v493
        %495 = vdwg.mxu0
        %v496 = vmax.f32 %v402, 0.0
        %v497 = vmax.f32 %v404, 0.0
        %v498 = vmax.f32 %v408, 0.0
        %v499 = vmax.f32 %v410, 0.0
        %v500 = vmax.f32 %v414, 0.0
        %v501 = vmax.f32 %v416, 0.0
        %v502 = vmax.f32 %v420, 0.0
        %v503 = vmax.f32 %v422, 0.0
        %v504 = vmax.f32 %v426, 0.0
        %v505 = vmax.f32 %v428, 0.0
        %v506 = vmax.f32 %v432, 0.0
        %v507 = vmax.f32 %v434, 0.0
        %v508 = vmax.f32 %v438, 0.0
        %v509 = vmax.f32 %v440, 0.0
        %v510 = vmax.f32 %v444, 0.0
        %v511 = vmax.f32 %v446, 0.0
        %v512 = vmax.f32 %v450, 0.0
        %v513 = vmax.f32 %v452, 0.0
        %v514 = vmax.f32 %v456, 0.0
        %v515 = vmax.f32 %v458, 0.0
        %v516 = vmax.f32 %v462, 0.0
        %v517 = vmax.f32 %v464, 0.0
        %v518 = vmax.f32 %v468, 0.0
        %v519 = vmax.f32 %v470, 0.0
        %v520 = vmax.f32 %v474, 0.0
        %v521 = vmax.f32 %v476, 0.0
        %v522 = vmax.f32 %v480, 0.0
        %v523 = vmax.f32 %v482, 0.0
        %v524 = vmax.f32 %v486, 0.0
        %v525 = vmax.f32 %v488, 0.0
        %v526 = vmax.f32 %v492, 0.0
        %v527 = vmax.f32 %v494, 0.0
        %v528 = vld [vmem:[#allocation7] sm:$0xff]
        %v529 = vld [vmem:[#allocation7 + $0x8] sm:$0xff]
        %v530 = vld [vmem:[#allocation7 + $0x10] sm:$0xff]
        %v531 = vld [vmem:[#allocation7 + $0x18] sm:$0xff]
        %v532 = vld [vmem:[#allocation7 + $0x20] sm:$0xff]
        %v533 = vld [vmem:[#allocation7 + $0x28] sm:$0xff]
        %v534 = vld [vmem:[#allocation7 + $0x30] sm:$0xff]
        %v535 = vld [vmem:[#allocation7 + $0x38] sm:$0xff]
        %v536 = vld [vmem:[#allocation7 + $0x40] sm:$0xff]
        %v537 = vld [vmem:[#allocation7 + $0x48] sm:$0xff]
        %v538 = vld [vmem:[#allocation7 + $0x50] sm:$0xff]
        %v539 = vld [vmem:[#allocation7 + $0x58] sm:$0xff]
        %v540 = vld [vmem:[#allocation7 + $0x60] sm:$0xff]
        %v541 = vld [vmem:[#allocation7 + $0x68] sm:$0xff]
        %v542 = vld [vmem:[#allocation7 + $0x70] sm:$0xff]
        %v543 = vld [vmem:[#allocation7 + $0x78] sm:$0xff]
        %v544 = vld [vmem:[#allocation7 + $0x80] sm:$0xff]
        %v545 = vld [vmem:[#allocation7 + $0x88] sm:$0xff]
        %v546 = vld [vmem:[#allocation7 + $0x90] sm:$0xff]
        %v547 = vld [vmem:[#allocation7 + $0x98] sm:$0xff]
        %v548 = vld [vmem:[#allocation7 + $0xa0] sm:$0xff]
        %v549 = vld [vmem:[#allocation7 + $0xa8] sm:$0xff]
        %v550 = vld [vmem:[#allocation7 + $0xb0] sm:$0xff]
        %v551 = vld [vmem:[#allocation7 + $0xb8] sm:$0xff]
        %v552 = vld [vmem:[#allocation7 + $0xc0] sm:$0xff]
        %v553 = vld [vmem:[#allocation7 + $0xc8] sm:$0xff]
        %v554 = vld [vmem:[#allocation7 + $0xd0] sm:$0xff]
        %v555 = vld [vmem:[#allocation7 + $0xd8] sm:$0xff]
        %v556 = vld [vmem:[#allocation7 + $0xe0] sm:$0xff]
        %v557 = vld [vmem:[#allocation7 + $0xe8] sm:$0xff]
        %v558 = vld [vmem:[#allocation7 + $0xf0] sm:$0xff]
        %v559 = vld [vmem:[#allocation7 + $0xf8] sm:$0xff]
        %v560 = vld [vmem:[#allocation7 + $0x100] sm:$0xff]
        %v561 = vld [vmem:[#allocation7 + $0x108] sm:$0xff]
        %v562 = vld [vmem:[#allocation7 + $0x110] sm:$0xff]
        %v563 = vld [vmem:[#allocation7 + $0x118] sm:$0xff]
        %v564 = vld [vmem:[#allocation7 + $0x120] sm:$0xff]
        %v565 = vld [vmem:[#allocation7 + $0x128] sm:$0xff]
        %v566 = vld [vmem:[#allocation7 + $0x130] sm:$0xff]
        %v567 = vld [vmem:[#allocation7 + $0x138] sm:$0xff]
        %v568 = vld [vmem:[#allocation7 + $0x140] sm:$0xff]
        %v569 = vld [vmem:[#allocation7 + $0x148] sm:$0xff]
        %v570 = vld [vmem:[#allocation7 + $0x150] sm:$0xff]
        %v571 = vld [vmem:[#allocation7 + $0x158] sm:$0xff]
        %v572 = vld [vmem:[#allocation7 + $0x160] sm:$0xff]
        %v573 = vld [vmem:[#allocation7 + $0x168] sm:$0xff]
        %v574 = vld [vmem:[#allocation7 + $0x170] sm:$0xff]
        %v575 = vld [vmem:[#allocation7 + $0x178] sm:$0xff]
        %v576 = vld [vmem:[#allocation7 + $0x180] sm:$0xff]
        %v577 = vld [vmem:[#allocation7 + $0x188] sm:$0xff]
        %v578 = vld [vmem:[#allocation7 + $0x190] sm:$0xff]
        %v579 = vld [vmem:[#allocation7 + $0x198] sm:$0xff]
        %v580 = vld [vmem:[#allocation7 + $0x1a0] sm:$0xff]
        %v581 = vld [vmem:[#allocation7 + $0x1a8] sm:$0xff]
        %v582 = vld [vmem:[#allocation7 + $0x1b0] sm:$0xff]
        %v583 = vld [vmem:[#allocation7 + $0x1b8] sm:$0xff]
        %v584 = vld [vmem:[#allocation7 + $0x1c0] sm:$0xff]
        %v585 = vld [vmem:[#allocation7 + $0x1c8] sm:$0xff]
        %v586 = vld [vmem:[#allocation7 + $0x1d0] sm:$0xff]
        %v587 = vld [vmem:[#allocation7 + $0x1d8] sm:$0xff]
        %v588 = vld [vmem:[#allocation7 + $0x1e0] sm:$0xff]
        %v589 = vld [vmem:[#allocation7 + $0x1e8] sm:$0xff]
        %v590 = vld [vmem:[#allocation7 + $0x1f0] sm:$0xff]
        %v591 = vld [vmem:[#allocation7 + $0x1f8] sm:$0xff]
        %v592 = vld [vmem:[#allocation7 + $0x200] sm:$0xff]
        %v593 = vld [vmem:[#allocation7 + $0x208] sm:$0xff]
        %v594 = vld [vmem:[#allocation7 + $0x210] sm:$0xff]
        %v595 = vld [vmem:[#allocation7 + $0x218] sm:$0xff]
        %v596 = vld [vmem:[#allocation7 + $0x220] sm:$0xff]
        %v597 = vld [vmem:[#allocation7 + $0x228] sm:$0xff]
        %v598 = vld [vmem:[#allocation7 + $0x230] sm:$0xff]
        %v599 = vld [vmem:[#allocation7 + $0x238] sm:$0xff]
        %v600 = vld [vmem:[#allocation7 + $0x240] sm:$0xff]
        %v601 = vld [vmem:[#allocation7 + $0x248] sm:$0xff]
        %v602 = vld [vmem:[#allocation7 + $0x250] sm:$0xff]
        %v603 = vld [vmem:[#allocation7 + $0x258] sm:$0xff]
        %v604 = vld [vmem:[#allocation7 + $0x260] sm:$0xff]
        %v605 = vld [vmem:[#allocation7 + $0x268] sm:$0xff]
        %v606 = vld [vmem:[#allocation7 + $0x270] sm:$0xff]
        %v607 = vld [vmem:[#allocation7 + $0x278] sm:$0xff]
        %v608 = vld [vmem:[#allocation7 + $0x280] sm:$0xff]
        %v609 = vld [vmem:[#allocation7 + $0x288] sm:$0xff]
        %v610 = vld [vmem:[#allocation7 + $0x290] sm:$0xff]
        %v611 = vld [vmem:[#allocation7 + $0x298] sm:$0xff]
        %v612 = vld [vmem:[#allocation7 + $0x2a0] sm:$0xff]
        %v613 = vld [vmem:[#allocation7 + $0x2a8] sm:$0xff]
        %v614 = vld [vmem:[#allocation7 + $0x2b0] sm:$0xff]
        %v615 = vld [vmem:[#allocation7 + $0x2b8] sm:$0xff]
        %v616 = vld [vmem:[#allocation7 + $0x2c0] sm:$0xff]
        %v617 = vld [vmem:[#allocation7 + $0x2c8] sm:$0xff]
        %v618 = vld [vmem:[#allocation7 + $0x2d0] sm:$0xff]
        %v619 = vld [vmem:[#allocation7 + $0x2d8] sm:$0xff]
        %v620 = vld [vmem:[#allocation7 + $0x2e0] sm:$0xff]
        %v621 = vld [vmem:[#allocation7 + $0x2e8] sm:$0xff]
        %v622 = vld [vmem:[#allocation7 + $0x2f0] sm:$0xff]
        %v623 = vld [vmem:[#allocation7 + $0x2f8] sm:$0xff]
        %624 = vmatprep.subr.mxu0 %v574
        %625 = vmatpush1.msra.mxu0 %v573
        %626 = vmatprep.subr.mxu0 %v571
        %627 = vmatpush1.msra.mxu0 %v570
        %628 = vmatprep.subr.mxu0 %v568
        %629 = vmatpush1.msra.mxu0 %v567
        %630 = vmatprep.subr.mxu0 %v565
        %631 = vmatpush1.msra.mxu0 %v564
        %632 = vmatprep.subr.mxu0 %v562
        %633 = vmatpush1.msra.mxu0 %v561
        %634 = vmatprep.subr.mxu0 %v559
        %635 = vmatpush1.msra.mxu0 %v558
        %636 = vmatprep.subr.mxu0 %v556
        %637 = vmatpush1.msra.mxu0 %v555
        %638 = vmatprep.subr.mxu0 %v553
        %639 = vmatpush1.msra.mxu0 %v552
        %640 = vmatprep.subr.mxu0 %v550
        %641 = vmatpush1.msra.mxu0 %v549
        %642 = vmatprep.subr.mxu0 %v547
        %643 = vmatpush1.msra.mxu0 %v546
        %644 = vmatprep.subr.mxu0 %v544
        %645 = vmatpush1.msra.mxu0 %v543
        %646 = vmatprep.subr.mxu0 %v541
        %647 = vmatpush1.msra.mxu0 %v540
        %648 = vmatprep.subr.mxu0 %v538
        %649 = vmatpush1.msra.mxu0 %v537
        %650 = vmatprep.subr.mxu0 %v535
        %651 = vmatpush1.msra.mxu0 %v534
        %652 = vmatprep.subr.mxu0 %v532
        %653 = vmatpush1.msra.mxu0 %v531
        %654 = vmatprep.subr.mxu0 %v529
        %655 = vmatpush1.msra.mxu0 %v528
        %656 = vmatprep.subr.mxu0 %v622
        %657 = vmatpush2.msra.mxu0 %v621
        %658 = vmatprep.subr.mxu0 %v619
        %659 = vmatpush2.msra.mxu0 %v618
        %660 = vmatprep.subr.mxu0 %v616
        %661 = vmatpush2.msra.mxu0 %v615
        %662 = vmatprep.subr.mxu0 %v613
        %663 = vmatpush2.msra.mxu0 %v612
        %664 = vmatprep.subr.mxu0 %v610
        %665 = vmatpush2.msra.mxu0 %v609
        %666 = vmatprep.subr.mxu0 %v607
        %667 = vmatpush2.msra.mxu0 %v606
        %668 = vmatprep.subr.mxu0 %v604
        %669 = vmatpush2.msra.mxu0 %v603
        %670 = vmatprep.subr.mxu0 %v601
        %671 = vmatpush2.msra.mxu0 %v600
        %672 = vmatprep.subr.mxu0 %v598
        %673 = vmatpush2.msra.mxu0 %v597
        %674 = vmatprep.subr.mxu0 %v595
        %675 = vmatpush2.msra.mxu0 %v594
        %676 = vmatprep.subr.mxu0 %v592
        %677 = vmatpush2.msra.mxu0 %v591
        %678 = vmatprep.subr.mxu0 %v589
        %679 = vmatpush2.msra.mxu0 %v588
        %680 = vmatprep.subr.mxu0 %v586
        %681 = vmatpush2.msra.mxu0 %v585
        %682 = vmatprep.subr.mxu0 %v583
        %683 = vmatpush2.msra.mxu0 %v582
        %684 = vmatprep.subr.mxu0 %v580
        %685 = vmatpush2.msra.mxu0 %v579
        %686 = vmatprep.subr.mxu0 %v577
        %687 = vmatpush2.msra.mxu0 %v576
        %688 = vmatprep.mubr.f32.mxu0 %v497
        %689 = vmatmul.mubr.f32.gmra.mxu0 %v496
        %v690 = vpop.f32.mrf.mxu0
        %v691 = vadd.f32 0.0, %v690
        %v692 = vpop.f32.mrf.mxu0
        %v693 = vadd.f32 0.0, %v692
        %694 = vmatprep.mubr.f32.mxu0 %v499
        %695 = vmatmul.mubr.f32.gmra.mxu0 %v498
        %v696 = vpop.f32.mrf.mxu0
        %v697 = vadd.f32 0.0, %v696
        %v698 = vpop.f32.mrf.mxu0
        %v699 = vadd.f32 0.0, %v698
        %700 = vmatprep.mubr.f32.mxu0 %v501
        %701 = vmatmul.mubr.f32.gmra.mxu0 %v500
        %v702 = vpop.f32.mrf.mxu0
        %v703 = vadd.f32 0.0, %v702
        %v704 = vpop.f32.mrf.mxu0
        %v705 = vadd.f32 0.0, %v704
        %706 = vmatprep.mubr.f32.mxu0 %v503
        %707 = vmatmul.mubr.f32.gmra.mxu0 %v502
        %v708 = vpop.f32.mrf.mxu0
        %v709 = vadd.f32 0.0, %v708
        %v710 = vpop.f32.mrf.mxu0
        %v711 = vadd.f32 0.0, %v710
        %712 = vmatprep.mubr.f32.mxu0 %v505
        %713 = vmatmul.mubr.f32.gmra.mxu0 %v504
        %v714 = vpop.f32.mrf.mxu0
        %v715 = vadd.f32 0.0, %v714
        %v716 = vpop.f32.mrf.mxu0
        %v717 = vadd.f32 0.0, %v716
        %718 = vmatprep.mubr.f32.mxu0 %v507
        %719 = vmatmul.mubr.f32.gmra.mxu0 %v506
        %v720 = vpop.f32.mrf.mxu0
        %v721 = vadd.f32 0.0, %v720
        %v722 = vpop.f32.mrf.mxu0
        %v723 = vadd.f32 0.0, %v722
        %724 = vmatprep.mubr.f32.mxu0 %v509
        %725 = vmatmul.mubr.f32.gmra.mxu0 %v508
        %v726 = vpop.f32.mrf.mxu0
        %v727 = vadd.f32 0.0, %v726
        %v728 = vpop.f32.mrf.mxu0
        %v729 = vadd.f32 0.0, %v728
        %730 = vmatprep.mubr.f32.mxu0 %v511
        %731 = vmatmul.mubr.f32.gmra.mxu0 %v510
        %v732 = vpop.f32.mrf.mxu0
        %v733 = vadd.f32 0.0, %v732
        %v734 = vpop.f32.mrf.mxu0
        %v735 = vadd.f32 0.0, %v734
        %736 = vmatprep.mubr.f32.mxu0 %v513
        %737 = vmatmul.mubr.f32.gmra.mxu0 %v512
        %v738 = vpop.f32.mrf.mxu0
        %v739 = vadd.f32 0.0, %v738
        %v740 = vpop.f32.mrf.mxu0
        %v741 = vadd.f32 0.0, %v740
        %742 = vmatprep.mubr.f32.mxu0 %v515
        %743 = vmatmul.mubr.f32.gmra.mxu0 %v514
        %v744 = vpop.f32.mrf.mxu0
        %v745 = vadd.f32 0.0, %v744
        %v746 = vpop.f32.mrf.mxu0
        %v747 = vadd.f32 0.0, %v746
        %748 = vmatprep.mubr.f32.mxu0 %v517
        %749 = vmatmul.mubr.f32.gmra.mxu0 %v516
        %v750 = vpop.f32.mrf.mxu0
        %v751 = vadd.f32 0.0, %v750
        %v752 = vpop.f32.mrf.mxu0
        %v753 = vadd.f32 0.0, %v752
        %754 = vmatprep.mubr.f32.mxu0 %v519
        %755 = vmatmul.mubr.f32.gmra.mxu0 %v518
        %v756 = vpop.f32.mrf.mxu0
        %v757 = vadd.f32 0.0, %v756
        %v758 = vpop.f32.mrf.mxu0
        %v759 = vadd.f32 0.0, %v758
        %760 = vmatprep.mubr.f32.mxu0 %v521
        %761 = vmatmul.mubr.f32.gmra.mxu0 %v520
        %v762 = vpop.f32.mrf.mxu0
        %v763 = vadd.f32 0.0, %v762
        %v764 = vpop.f32.mrf.mxu0
        %v765 = vadd.f32 0.0, %v764
        %766 = vmatprep.mubr.f32.mxu0 %v523
        %767 = vmatmul.mubr.f32.gmra.mxu0 %v522
        %v768 = vpop.f32.mrf.mxu0
        %v769 = vadd.f32 0.0, %v768
        %v770 = vpop.f32.mrf.mxu0
        %v771 = vadd.f32 0.0, %v770
        %772 = vmatprep.mubr.f32.mxu0 %v525
        %773 = vmatmul.mubr.f32.gmra.mxu0 %v524
        %v774 = vpop.f32.mrf.mxu0
        %v775 = vadd.f32 0.0, %v774
        %v776 = vpop.f32.mrf.mxu0
        %v777 = vadd.f32 0.0, %v776
        %778 = vmatprep.mubr.f32.mxu0 %v527
        %779 = vmatmul.mubr.f32.gmra.mxu0 %v526
        %v780 = vpop.f32.mrf.mxu0
        %v781 = vadd.f32 0.0, %v780
        %v782 = vpop.f32.mrf.mxu0
        %v783 = vadd.f32 0.0, %v782
        %784 = vdwg.mxu0
        %785 = vmatprep.subr.mxu0 0.0
        %786 = vmatpush1.msra.mxu0 %v575
        %787 = vmatprep.subr.mxu0 0.0
        %788 = vmatpush1.msra.mxu0 %v572
        %789 = vmatprep.subr.mxu0 0.0
        %790 = vmatpush1.msra.mxu0 %v569
        %791 = vmatprep.subr.mxu0 0.0
        %792 = vmatpush1.msra.mxu0 %v566
        %793 = vmatprep.subr.mxu0 0.0
        %794 = vmatpush1.msra.mxu0 %v563
        %795 = vmatprep.subr.mxu0 0.0
        %796 = vmatpush1.msra.mxu0 %v560
        %797 = vmatprep.subr.mxu0 0.0
        %798 = vmatpush1.msra.mxu0 %v557
        %799 = vmatprep.subr.mxu0 0.0
        %800 = vmatpush1.msra.mxu0 %v554
        %801 = vmatprep.subr.mxu0 0.0
        %802 = vmatpush1.msra.mxu0 %v551
        %803 = vmatprep.subr.mxu0 0.0
        %804 = vmatpush1.msra.mxu0 %v548
        %805 = vmatprep.subr.mxu0 0.0
        %806 = vmatpush1.msra.mxu0 %v545
        %807 = vmatprep.subr.mxu0 0.0
        %808 = vmatpush1.msra.mxu0 %v542
        %809 = vmatprep.subr.mxu0 0.0
        %810 = vmatpush1.msra.mxu0 %v539
        %811 = vmatprep.subr.mxu0 0.0
        %812 = vmatpush1.msra.mxu0 %v536
        %813 = vmatprep.subr.mxu0 0.0
        %814 = vmatpush1.msra.mxu0 %v533
        %815 = vmatprep.subr.mxu0 0.0
        %816 = vmatpush1.msra.mxu0 %v530
        %817 = vmatprep.subr.mxu0 0.0
        %818 = vmatpush2.msra.mxu0 %v623
        %819 = vmatprep.subr.mxu0 0.0
        %820 = vmatpush2.msra.mxu0 %v620
        %821 = vmatprep.subr.mxu0 0.0
        %822 = vmatpush2.msra.mxu0 %v617
        %823 = vmatprep.subr.mxu0 0.0
        %824 = vmatpush2.msra.mxu0 %v614
        %825 = vmatprep.subr.mxu0 0.0
        %826 = vmatpush2.msra.mxu0 %v611
        %827 = vmatprep.subr.mxu0 0.0
        %828 = vmatpush2.msra.mxu0 %v608
        %829 = vmatprep.subr.mxu0 0.0
        %830 = vmatpush2.msra.mxu0 %v605
        %831 = vmatprep.subr.mxu0 0.0
        %832 = vmatpush2.msra.mxu0 %v602
        %833 = vmatprep.subr.mxu0 0.0
        %834 = vmatpush2.msra.mxu0 %v599
        %835 = vmatprep.subr.mxu0 0.0
        %836 = vmatpush2.msra.mxu0 %v596
        %837 = vmatprep.subr.mxu0 0.0
        %838 = vmatpush2.msra.mxu0 %v593
        %839 = vmatprep.subr.mxu0 0.0
        %840 = vmatpush2.msra.mxu0 %v590
        %841 = vmatprep.subr.mxu0 0.0
        %842 = vmatpush2.msra.mxu0 %v587
        %843 = vmatprep.subr.mxu0 0.0
        %844 = vmatpush2.msra.mxu0 %v584
        %845 = vmatprep.subr.mxu0 0.0
        %846 = vmatpush2.msra.mxu0 %v581
        %847 = vmatprep.subr.mxu0 0.0
        %848 = vmatpush2.msra.mxu0 %v578
        %849 = vmatprep.mubr.f32.mxu0 %v497
        %850 = vmatmul.mubr.f32.gmra.mxu0 %v496
        %v851 = vpop.f32.mrf.mxu0
        %v852 = vadd.f32 0.0, %v851
        %v853 = vpop.f32.mrf.mxu0
        %854 = vmatprep.mubr.f32.mxu0 %v499
        %855 = vmatmul.mubr.f32.gmra.mxu0 %v498
        %v856 = vpop.f32.mrf.mxu0
        %v857 = vadd.f32 0.0, %v856
        %v858 = vpop.f32.mrf.mxu0
        %859 = vmatprep.mubr.f32.mxu0 %v501
        %860 = vmatmul.mubr.f32.gmra.mxu0 %v500
        %v861 = vpop.f32.mrf.mxu0
        %v862 = vadd.f32 0.0, %v861
        %v863 = vpop.f32.mrf.mxu0
        %864 = vmatprep.mubr.f32.mxu0 %v503
        %865 = vmatmul.mubr.f32.gmra.mxu0 %v502
        %v866 = vpop.f32.mrf.mxu0
        %v867 = vadd.f32 0.0, %v866
        %v868 = vpop.f32.mrf.mxu0
        %869 = vmatprep.mubr.f32.mxu0 %v505
        %870 = vmatmul.mubr.f32.gmra.mxu0 %v504
        %v871 = vpop.f32.mrf.mxu0
        %v872 = vadd.f32 0.0, %v871
        %v873 = vpop.f32.mrf.mxu0
        %874 = vmatprep.mubr.f32.mxu0 %v507
        %875 = vmatmul.mubr.f32.gmra.mxu0 %v506
        %v876 = vpop.f32.mrf.mxu0
        %v877 = vadd.f32 0.0, %v876
        %v878 = vpop.f32.mrf.mxu0
        %879 = vmatprep.mubr.f32.mxu0 %v509
        %880 = vmatmul.mubr.f32.gmra.mxu0 %v508
        %v881 = vpop.f32.mrf.mxu0
        %v882 = vadd.f32 0.0, %v881
        %v883 = vpop.f32.mrf.mxu0
        %884 = vmatprep.mubr.f32.mxu0 %v511
        %885 = vmatmul.mubr.f32.gmra.mxu0 %v510
        %v886 = vpop.f32.mrf.mxu0
        %v887 = vadd.f32 0.0, %v886
        %v888 = vpop.f32.mrf.mxu0
        %889 = vmatprep.mubr.f32.mxu0 %v513
        %890 = vmatmul.mubr.f32.gmra.mxu0 %v512
        %v891 = vpop.f32.mrf.mxu0
        %v892 = vadd.f32 0.0, %v891
        %v893 = vpop.f32.mrf.mxu0
        %894 = vmatprep.mubr.f32.mxu0 %v515
        %895 = vmatmul.mubr.f32.gmra.mxu0 %v514
        %v896 = vpop.f32.mrf.mxu0
        %v897 = vadd.f32 0.0, %v896
        %v898 = vpop.f32.mrf.mxu0
        %899 = vmatprep.mubr.f32.mxu0 %v517
        %900 = vmatmul.mubr.f32.gmra.mxu0 %v516
        %v901 = vpop.f32.mrf.mxu0
        %v902 = vadd.f32 0.0, %v901
        %v903 = vpop.f32.mrf.mxu0
        %904 = vmatprep.mubr.f32.mxu0 %v519
        %905 = vmatmul.mubr.f32.gmra.mxu0 %v518
        %v906 = vpop.f32.mrf.mxu0
        %v907 = vadd.f32 0.0, %v906
        %v908 = vpop.f32.mrf.mxu0
        %909 = vmatprep.mubr.f32.mxu0 %v521
        %910 = vmatmul.mubr.f32.gmra.mxu0 %v520
        %v911 = vpop.f32.mrf.mxu0
        %v912 = vadd.f32 0.0, %v911
        %v913 = vpop.f32.mrf.mxu0
        %914 = vmatprep.mubr.f32.mxu0 %v523
        %915 = vmatmul.mubr.f32.gmra.mxu0 %v522
        %v916 = vpop.f32.mrf.mxu0
        %v917 = vadd.f32 0.0, %v916
        %v918 = vpop.f32.mrf.mxu0
        %919 = vmatprep.mubr.f32.mxu0 %v525
        %920 = vmatmul.mubr.f32.gmra.mxu0 %v524
        %v921 = vpop.f32.mrf.mxu0
        %v922 = vadd.f32 0.0, %v921
        %v923 = vpop.f32.mrf.mxu0
        %924 = vmatprep.mubr.f32.mxu0 %v527
        %925 = vmatmul.mubr.f32.gmra.mxu0 %v526
        %v926 = vpop.f32.mrf.mxu0
        %v927 = vadd.f32 0.0, %v926
        %v928 = vpop.f32.mrf.mxu0
        %929 = vdwg.mxu0
        %v930 = vlaneseq
        %v931 = vshrl.u32 %v930, 7
        %v932 = vadd.s32 %v931, 8
        %v933 = vadd.s32 %v931, 16
        %v934 = vadd.s32 %v931, 24
        %v935 = vadd.s32 %v931, 32
        %v936 = vadd.s32 %v931, 40
        %v937 = vadd.s32 %v931, 48
        %v938 = vadd.s32 %v931, 56
        %v939 = vadd.s32 %v931, 64
        %v940 = vadd.s32 %v931, 72
        %v941 = vadd.s32 %v931, 80
        %v942 = vadd.s32 %v931, 88
        %v943 = vadd.s32 %v931, 96
        %v944 = vadd.s32 %v931, 104
        %v945 = vadd.s32 %v931, 112
        %v946 = vadd.s32 %v931, 120
        %vm947 = vcmp.lt.s32.totalorder %v931, 0
        %v948 = vsub.s32 0, %v931
        %v949 = vsel %vm947, %v948, %v931
        %v950 = vshrl.u32 %v949, 4
        %v951 = vand.u32 %v949, 15
        %v952 = vsub.s32 0, %v951
        %v953 = vsel %vm947, %v952, %v951
        %vm954 = vcmp.lt.s32.totalorder %v932, 0
        %v955 = vsub.s32 0, %v932
        %v956 = vsel %vm954, %v955, %v932
        %v957 = vshrl.u32 %v956, 4
        %v958 = vand.u32 %v956, 15
        %v959 = vsub.s32 0, %v958
        %v960 = vsel %vm954, %v959, %v958
        %vm961 = vcmp.lt.s32.totalorder %v933, 0
        %v962 = vsub.s32 0, %v933
        %v963 = vsel %vm961, %v962, %v933
        %v964 = vshrl.u32 %v963, 4
        %v965 = vand.u32 %v963, 15
        %v966 = vsub.s32 0, %v965
        %v967 = vsel %vm961, %v966, %v965
        %vm968 = vcmp.lt.s32.totalorder %v934, 0
        %v969 = vsub.s32 0, %v934
        %v970 = vsel %vm968, %v969, %v934
        %v971 = vshrl.u32 %v970, 4
        %v972 = vand.u32 %v970, 15
        %v973 = vsub.s32 0, %v972
        %v974 = vsel %vm968, %v973, %v972
        %vm975 = vcmp.lt.s32.totalorder %v935, 0
        %v976 = vsub.s32 0, %v935
        %v977 = vsel %vm975, %v976, %v935
        %v978 = vshrl.u32 %v977, 4
        %v979 = vand.u32 %v977, 15
        %v980 = vsub.s32 0, %v979
        %v981 = vsel %vm975, %v980, %v979
        %vm982 = vcmp.lt.s32.totalorder %v936, 0
        %v983 = vsub.s32 0, %v936
        %v984 = vsel %vm982, %v983, %v936
        %v985 = vshrl.u32 %v984, 4
        %v986 = vand.u32 %v984, 15
        %v987 = vsub.s32 0, %v986
        %v988 = vsel %vm982, %v987, %v986
        %vm989 = vcmp.lt.s32.totalorder %v937, 0
        %v990 = vsub.s32 0, %v937
        %v991 = vsel %vm989, %v990, %v937
        %v992 = vshrl.u32 %v991, 4
        %v993 = vand.u32 %v991, 15
        %v994 = vsub.s32 0, %v993
        %v995 = vsel %vm989, %v994, %v993
        %vm996 = vcmp.lt.s32.totalorder %v938, 0
        %v997 = vsub.s32 0, %v938
        %v998 = vsel %vm996, %v997, %v938
        %v999 = vshrl.u32 %v998, 4
        %v1000 = vand.u32 %v998, 15
        %v1001 = vsub.s32 0, %v1000
        %v1002 = vsel %vm996, %v1001, %v1000
        %vm1003 = vcmp.lt.s32.totalorder %v939, 0
        %v1004 = vsub.s32 0, %v939
        %v1005 = vsel %vm1003, %v1004, %v939
        %v1006 = vshrl.u32 %v1005, 4
        %v1007 = vand.u32 %v1005, 15
        %v1008 = vsub.s32 0, %v1007
        %v1009 = vsel %vm1003, %v1008, %v1007
        %vm1010 = vcmp.lt.s32.totalorder %v940, 0
        %v1011 = vsub.s32 0, %v940
        %v1012 = vsel %vm1010, %v1011, %v940
        %v1013 = vshrl.u32 %v1012, 4
        %v1014 = vand.u32 %v1012, 15
        %v1015 = vsub.s32 0, %v1014
        %v1016 = vsel %vm1010, %v1015, %v1014
        %vm1017 = vcmp.lt.s32.totalorder %v941, 0
        %v1018 = vsub.s32 0, %v941
        %v1019 = vsel %vm1017, %v1018, %v941
        %v1020 = vshrl.u32 %v1019, 4
        %v1021 = vand.u32 %v1019, 15
        %v1022 = vsub.s32 0, %v1021
        %v1023 = vsel %vm1017, %v1022, %v1021
        %vm1024 = vcmp.lt.s32.totalorder %v942, 0
        %v1025 = vsub.s32 0, %v942
        %v1026 = vsel %vm1024, %v1025, %v942
        %v1027 = vshrl.u32 %v1026, 4
        %v1028 = vand.u32 %v1026, 15
        %v1029 = vsub.s32 0, %v1028
        %v1030 = vsel %vm1024, %v1029, %v1028
        %vm1031 = vcmp.lt.s32.totalorder %v943, 0
        %v1032 = vsub.s32 0, %v943
        %v1033 = vsel %vm1031, %v1032, %v943
        %v1034 = vshrl.u32 %v1033, 4
        %v1035 = vand.u32 %v1033, 15
        %v1036 = vsub.s32 0, %v1035
        %v1037 = vsel %vm1031, %v1036, %v1035
        %vm1038 = vcmp.lt.s32.totalorder %v944, 0
        %v1039 = vsub.s32 0, %v944
        %v1040 = vsel %vm1038, %v1039, %v944
        %v1041 = vshrl.u32 %v1040, 4
        %v1042 = vand.u32 %v1040, 15
        %v1043 = vsub.s32 0, %v1042
        %v1044 = vsel %vm1038, %v1043, %v1042
        %vm1045 = vcmp.lt.s32.totalorder %v945, 0
        %v1046 = vsub.s32 0, %v945
        %v1047 = vsel %vm1045, %v1046, %v945
        %v1048 = vshrl.u32 %v1047, 4
        %v1049 = vand.u32 %v1047, 15
        %v1050 = vsub.s32 0, %v1049
        %v1051 = vsel %vm1045, %v1050, %v1049
        %vm1052 = vcmp.lt.s32.totalorder %v946, 0
        %v1053 = vsub.s32 0, %v946
        %v1054 = vsel %vm1052, %v1053, %v946
        %v1055 = vshrl.u32 %v1054, 4
        %v1056 = vand.u32 %v1054, 15
        %v1057 = vsub.s32 0, %v1056
        %v1058 = vsel %vm1052, %v1057, %v1056
        %vm1059 = vcmp.ne.s32.totalorder %v953, 0
        %vm1060 = vcmp.ne.s32.totalorder %v960, 0
        %vm1061 = vcmp.ne.s32.totalorder %v967, 0
        %vm1062 = vcmp.ne.s32.totalorder %v974, 0
        %vm1063 = vcmp.ne.s32.totalorder %v981, 0
        %vm1064 = vcmp.ne.s32.totalorder %v988, 0
        %vm1065 = vcmp.ne.s32.totalorder %v995, 0
        %vm1066 = vcmp.ne.s32.totalorder %v1002, 0
        %vm1067 = vcmp.ne.s32.totalorder %v1009, 0
        %vm1068 = vcmp.ne.s32.totalorder %v1016, 0
        %vm1069 = vcmp.ne.s32.totalorder %v1023, 0
        %vm1070 = vcmp.ne.s32.totalorder %v1030, 0
        %vm1071 = vcmp.ne.s32.totalorder %v1037, 0
        %vm1072 = vcmp.ne.s32.totalorder %v1044, 0
        %vm1073 = vcmp.ne.s32.totalorder %v1051, 0
        %vm1074 = vcmp.ne.s32.totalorder %v1058, 0
        %vm1075 = vcmp.lt.s32.totalorder %v953, 0
        %vm1076 = vcmp.lt.s32.totalorder %v960, 0
        %vm1077 = vcmp.lt.s32.totalorder %v967, 0
        %vm1078 = vcmp.lt.s32.totalorder %v974, 0
        %vm1079 = vcmp.lt.s32.totalorder %v981, 0
        %vm1080 = vcmp.lt.s32.totalorder %v988, 0
        %vm1081 = vcmp.lt.s32.totalorder %v995, 0
        %vm1082 = vcmp.lt.s32.totalorder %v1002, 0
        %vm1083 = vcmp.lt.s32.totalorder %v1009, 0
        %vm1084 = vcmp.lt.s32.totalorder %v1016, 0
        %vm1085 = vcmp.lt.s32.totalorder %v1023, 0
        %vm1086 = vcmp.lt.s32.totalorder %v1030, 0
        %vm1087 = vcmp.lt.s32.totalorder %v1037, 0
        %vm1088 = vcmp.lt.s32.totalorder %v1044, 0
        %vm1089 = vcmp.lt.s32.totalorder %v1051, 0
        %vm1090 = vcmp.lt.s32.totalorder %v1058, 0
        %vm1091 = vmand %vm1075, %vm1059
        %vm1092 = vmand %vm1076, %vm1060
        %vm1093 = vmand %vm1077, %vm1061
        %vm1094 = vmand %vm1078, %vm1062
        %vm1095 = vmand %vm1079, %vm1063
        %vm1096 = vmand %vm1080, %vm1064
        %vm1097 = vmand %vm1081, %vm1065
        %vm1098 = vmand %vm1082, %vm1066
        %vm1099 = vmand %vm1083, %vm1067
        %vm1100 = vmand %vm1084, %vm1068
        %vm1101 = vmand %vm1085, %vm1069
        %vm1102 = vmand %vm1086, %vm1070
        %vm1103 = vmand %vm1087, %vm1071
        %vm1104 = vmand %vm1088, %vm1072
        %vm1105 = vmand %vm1089, %vm1073
        %vm1106 = vmand %vm1090, %vm1074
        %v1107 = vadd.s32 %v953, 16
        %v1108 = vadd.s32 %v960, 16
        %v1109 = vadd.s32 %v967, 16
        %v1110 = vadd.s32 %v974, 16
        %v1111 = vadd.s32 %v981, 16
        %v1112 = vadd.s32 %v988, 16
        %v1113 = vadd.s32 %v995, 16
        %v1114 = vadd.s32 %v1002, 16
        %v1115 = vadd.s32 %v1009, 16
        %v1116 = vadd.s32 %v1016, 16
        %v1117 = vadd.s32 %v1023, 16
        %v1118 = vadd.s32 %v1030, 16
        %v1119 = vadd.s32 %v1037, 16
        %v1120 = vadd.s32 %v1044, 16
        %v1121 = vadd.s32 %v1051, 16
        %v1122 = vadd.s32 %v1058, 16
        %v1123 = vsel %vm1091, %v1107, %v953
        %v1124 = vsel %vm1092, %v1108, %v960
        %v1125 = vsel %vm1093, %v1109, %v967
        %v1126 = vsel %vm1094, %v1110, %v974
        %v1127 = vsel %vm1095, %v1111, %v981
        %v1128 = vsel %vm1096, %v1112, %v988
        %v1129 = vsel %vm1097, %v1113, %v995
        %v1130 = vsel %vm1098, %v1114, %v1002
        %v1131 = vsel %vm1099, %v1115, %v1009
        %v1132 = vsel %vm1100, %v1116, %v1016
        %v1133 = vsel %vm1101, %v1117, %v1023
        %v1134 = vsel %vm1102, %v1118, %v1030
        %v1135 = vsel %vm1103, %v1119, %v1037
        %v1136 = vsel %vm1104, %v1120, %v1044
        %v1137 = vsel %vm1105, %v1121, %v1051
        %v1138 = vsel %vm1106, %v1122, %v1058
        %vm1139 = vcmp.eq.s32.totalorder %v1123, 0
        %vm1140 = vcmp.eq.s32.totalorder %v1124, 0
        %vm1141 = vcmp.eq.s32.totalorder %v1125, 0
        %vm1142 = vcmp.eq.s32.totalorder %v1126, 0
        %vm1143 = vcmp.eq.s32.totalorder %v1127, 0
        %vm1144 = vcmp.eq.s32.totalorder %v1128, 0
        %vm1145 = vcmp.eq.s32.totalorder %v1129, 0
        %vm1146 = vcmp.eq.s32.totalorder %v1130, 0
        %vm1147 = vcmp.eq.s32.totalorder %v1131, 0
        %vm1148 = vcmp.eq.s32.totalorder %v1132, 0
        %vm1149 = vcmp.eq.s32.totalorder %v1133, 0
        %vm1150 = vcmp.eq.s32.totalorder %v1134, 0
        %vm1151 = vcmp.eq.s32.totalorder %v1135, 0
        %vm1152 = vcmp.eq.s32.totalorder %v1136, 0
        %vm1153 = vcmp.eq.s32.totalorder %v1137, 0
        %vm1154 = vcmp.eq.s32.totalorder %v1138, 0
        %v1155 = vrot.slane %v691, 7
        %v1156 = vrot.slane %v697, 7
        %v1157 = vrot.slane %v703, 7
        %v1158 = vrot.slane %v709, 7
        %v1159 = vrot.slane %v715, 7
        %v1160 = vrot.slane %v721, 7
        %v1161 = vrot.slane %v727, 7
        %v1162 = vrot.slane %v733, 7
        %v1163 = vrot.slane %v739, 7
        %v1164 = vrot.slane %v745, 7
        %v1165 = vrot.slane %v751, 7
        %v1166 = vrot.slane %v757, 7
        %v1167 = vrot.slane %v763, 7
        %v1168 = vrot.slane %v769, 7
        %v1169 = vrot.slane %v775, 7
        %v1170 = vrot.slane %v781, 7
        %vm1171 = vcmp.lt.s32.totalorder %v931, 1
        %v1172 = vsel %vm1171, %v1169, %v1170
        %v1173 = vsel %vm1171, %v1168, %v1169
        %v1174 = vsel %vm1171, %v1167, %v1168
        %v1175 = vsel %vm1171, %v1166, %v1167
        %v1176 = vsel %vm1171, %v1165, %v1166
        %v1177 = vsel %vm1171, %v1164, %v1165
        %v1178 = vsel %vm1171, %v1163, %v1164
        %v1179 = vsel %vm1171, %v1162, %v1163
        %v1180 = vsel %vm1171, %v1161, %v1162
        %v1181 = vsel %vm1171, %v1160, %v1161
        %v1182 = vsel %vm1171, %v1159, %v1160
        %v1183 = vsel %vm1171, %v1158, %v1159
        %v1184 = vsel %vm1171, %v1157, %v1158
        %v1185 = vsel %vm1171, %v1156, %v1157
        %v1186 = vsel %vm1171, %v1155, %v1156
        %v1187 = vsel %vm1171, %v1170, %v1155
        %v1188 = vsel %vm1139, 1, 0
        %v1189 = vsel %vm1140, 1, 0
        %v1190 = vsel %vm1141, 1, 0
        %v1191 = vsel %vm1142, 1, 0
        %v1192 = vsel %vm1143, 1, 0
        %v1193 = vsel %vm1144, 1, 0
        %v1194 = vsel %vm1145, 1, 0
        %v1195 = vsel %vm1146, 1, 0
        %v1196 = vsel %vm1147, 1, 0
        %v1197 = vsel %vm1148, 1, 0
        %v1198 = vsel %vm1149, 1, 0
        %v1199 = vsel %vm1150, 1, 0
        %v1200 = vsel %vm1151, 1, 0
        %v1201 = vsel %vm1152, 1, 0
        %v1202 = vsel %vm1153, 1, 0
        %v1203 = vsel %vm1154, 1, 0
        %vm1204 = vcmp.eq.s32.totalorder %v1188, 1
        %vm1205 = vcmp.eq.s32.totalorder %v1189, 1
        %vm1206 = vcmp.eq.s32.totalorder %v1190, 1
        %vm1207 = vcmp.eq.s32.totalorder %v1191, 1
        %vm1208 = vcmp.eq.s32.totalorder %v1192, 1
        %vm1209 = vcmp.eq.s32.totalorder %v1193, 1
        %vm1210 = vcmp.eq.s32.totalorder %v1194, 1
        %vm1211 = vcmp.eq.s32.totalorder %v1195, 1
        %vm1212 = vcmp.eq.s32.totalorder %v1196, 1
        %vm1213 = vcmp.eq.s32.totalorder %v1197, 1
        %vm1214 = vcmp.eq.s32.totalorder %v1198, 1
        %vm1215 = vcmp.eq.s32.totalorder %v1199, 1
        %vm1216 = vcmp.eq.s32.totalorder %v1200, 1
        %vm1217 = vcmp.eq.s32.totalorder %v1201, 1
        %vm1218 = vcmp.eq.s32.totalorder %v1202, 1
        %vm1219 = vcmp.eq.s32.totalorder %v1203, 1
        %v1220 = vsel %vm1204, 0.0, %v1187
        %v1221 = vsel %vm1205, 0.0, %v1186
        %v1222 = vsel %vm1206, 0.0, %v1185
        %v1223 = vsel %vm1207, 0.0, %v1184
        %v1224 = vsel %vm1208, 0.0, %v1183
        %v1225 = vsel %vm1209, 0.0, %v1182
        %v1226 = vsel %vm1210, 0.0, %v1181
        %v1227 = vsel %vm1211, 0.0, %v1180
        %v1228 = vsel %vm1212, 0.0, %v1179
        %v1229 = vsel %vm1213, 0.0, %v1178
        %v1230 = vsel %vm1214, 0.0, %v1177
        %v1231 = vsel %vm1215, 0.0, %v1176
        %v1232 = vsel %vm1216, 0.0, %v1175
        %v1233 = vsel %vm1217, 0.0, %v1174
        %v1234 = vsel %vm1218, 0.0, %v1173
        %v1235 = vsel %vm1219, 0.0, %v1172
        %v1236 = vadd.f32 %v1220, %v693
        %v1237 = vadd.f32 %v1221, %v699
        %v1238 = vadd.f32 %v1222, %v705
        %v1239 = vadd.f32 %v1223, %v711
        %v1240 = vadd.f32 %v1224, %v717
        %v1241 = vadd.f32 %v1225, %v723
        %v1242 = vadd.f32 %v1226, %v729
        %v1243 = vadd.f32 %v1227, %v735
        %v1244 = vadd.f32 %v1228, %v741
        %v1245 = vadd.f32 %v1229, %v747
        %v1246 = vadd.f32 %v1230, %v753
        %v1247 = vadd.f32 %v1231, %v759
        %v1248 = vadd.f32 %v1232, %v765
        %v1249 = vadd.f32 %v1233, %v771
        %v1250 = vadd.f32 %v1234, %v777
        %v1251 = vadd.f32 %v1235, %v783
        %vm1252 = vcmp.eq.s32.totalorder %v1123, 15
        %vm1253 = vcmp.eq.s32.totalorder %v1124, 15
        %vm1254 = vcmp.eq.s32.totalorder %v1125, 15
        %vm1255 = vcmp.eq.s32.totalorder %v1126, 15
        %vm1256 = vcmp.eq.s32.totalorder %v1127, 15
        %vm1257 = vcmp.eq.s32.totalorder %v1128, 15
        %vm1258 = vcmp.eq.s32.totalorder %v1129, 15
        %vm1259 = vcmp.eq.s32.totalorder %v1130, 15
        %vm1260 = vcmp.eq.s32.totalorder %v1131, 15
        %vm1261 = vcmp.eq.s32.totalorder %v1132, 15
        %vm1262 = vcmp.eq.s32.totalorder %v1133, 15
        %vm1263 = vcmp.eq.s32.totalorder %v1134, 15
        %vm1264 = vcmp.eq.s32.totalorder %v1135, 15
        %vm1265 = vcmp.eq.s32.totalorder %v1136, 15
        %vm1266 = vcmp.eq.s32.totalorder %v1137, 15
        %vm1267 = vcmp.eq.s32.totalorder %v1138, 15
        %v1268 = vrot.slane %v852, 1
        %v1269 = vrot.slane %v857, 1
        %v1270 = vrot.slane %v862, 1
        %v1271 = vrot.slane %v867, 1
        %v1272 = vrot.slane %v872, 1
        %v1273 = vrot.slane %v877, 1
        %v1274 = vrot.slane %v882, 1
        %v1275 = vrot.slane %v887, 1
        %v1276 = vrot.slane %v892, 1
        %v1277 = vrot.slane %v897, 1
        %v1278 = vrot.slane %v902, 1
        %v1279 = vrot.slane %v907, 1
        %v1280 = vrot.slane %v912, 1
        %v1281 = vrot.slane %v917, 1
        %v1282 = vrot.slane %v922, 1
        %v1283 = vrot.slane %v927, 1
        %vm1284 = vcmp.lt.s32.totalorder %v931, 7
        %v1285 = vsel %vm1284, %v1282, %v1283
        %v1286 = vsel %vm1284, %v1281, %v1282
        %v1287 = vsel %vm1284, %v1280, %v1281
        %v1288 = vsel %vm1284, %v1279, %v1280
        %v1289 = vsel %vm1284, %v1278, %v1279
        %v1290 = vsel %vm1284, %v1277, %v1278
        %v1291 = vsel %vm1284, %v1276, %v1277
        %v1292 = vsel %vm1284, %v1275, %v1276
        %v1293 = vsel %vm1284, %v1274, %v1275
        %v1294 = vsel %vm1284, %v1273, %v1274
        %v1295 = vsel %vm1284, %v1272, %v1273
        %v1296 = vsel %vm1284, %v1271, %v1272
        %v1297 = vsel %vm1284, %v1270, %v1271
        %v1298 = vsel %vm1284, %v1269, %v1270
        %v1299 = vsel %vm1284, %v1268, %v1269
        %v1300 = vsel %vm1284, %v1283, %v1268
        %v1301 = vsel %vm1252, 1, 0
        %v1302 = vsel %vm1253, 1, 0
        %v1303 = vsel %vm1254, 1, 0
        %v1304 = vsel %vm1255, 1, 0
        %v1305 = vsel %vm1256, 1, 0
        %v1306 = vsel %vm1257, 1, 0
        %v1307 = vsel %vm1258, 1, 0
        %v1308 = vsel %vm1259, 1, 0
        %v1309 = vsel %vm1260, 1, 0
        %v1310 = vsel %vm1261, 1, 0
        %v1311 = vsel %vm1262, 1, 0
        %v1312 = vsel %vm1263, 1, 0
        %v1313 = vsel %vm1264, 1, 0
        %v1314 = vsel %vm1265, 1, 0
        %v1315 = vsel %vm1266, 1, 0
        %v1316 = vsel %vm1267, 1, 0
        %vm1317 = vcmp.eq.s32.totalorder %v1301, 1
        %vm1318 = vcmp.eq.s32.totalorder %v1302, 1
        %vm1319 = vcmp.eq.s32.totalorder %v1303, 1
        %vm1320 = vcmp.eq.s32.totalorder %v1304, 1
        %vm1321 = vcmp.eq.s32.totalorder %v1305, 1
        %vm1322 = vcmp.eq.s32.totalorder %v1306, 1
        %vm1323 = vcmp.eq.s32.totalorder %v1307, 1
        %vm1324 = vcmp.eq.s32.totalorder %v1308, 1
        %vm1325 = vcmp.eq.s32.totalorder %v1309, 1
        %vm1326 = vcmp.eq.s32.totalorder %v1310, 1
        %vm1327 = vcmp.eq.s32.totalorder %v1311, 1
        %vm1328 = vcmp.eq.s32.totalorder %v1312, 1
        %vm1329 = vcmp.eq.s32.totalorder %v1313, 1
        %vm1330 = vcmp.eq.s32.totalorder %v1314, 1
        %vm1331 = vcmp.eq.s32.totalorder %v1315, 1
        %vm1332 = vcmp.eq.s32.totalorder %v1316, 1
        %v1333 = vsel %vm1317, 0.0, %v1299
        %v1334 = vsel %vm1318, 0.0, %v1298
        %v1335 = vsel %vm1319, 0.0, %v1297
        %v1336 = vsel %vm1320, 0.0, %v1296
        %v1337 = vsel %vm1321, 0.0, %v1295
        %v1338 = vsel %vm1322, 0.0, %v1294
        %v1339 = vsel %vm1323, 0.0, %v1293
        %v1340 = vsel %vm1324, 0.0, %v1292
        %v1341 = vsel %vm1325, 0.0, %v1291
        %v1342 = vsel %vm1326, 0.0, %v1290
        %v1343 = vsel %vm1327, 0.0, %v1289
        %v1344 = vsel %vm1328, 0.0, %v1288
        %v1345 = vsel %vm1329, 0.0, %v1287
        %v1346 = vsel %vm1330, 0.0, %v1286
        %v1347 = vsel %vm1331, 0.0, %v1285
        %v1348 = vsel %vm1332, 0.0, %v1300
        %v1349 = vadd.f32 %v1236, %v1333
        %v1350 = vadd.f32 %v1237, %v1334
        %v1351 = vadd.f32 %v1238, %v1335
        %v1352 = vadd.f32 %v1239, %v1336
        %v1353 = vadd.f32 %v1240, %v1337
        %v1354 = vadd.f32 %v1241, %v1338
        %v1355 = vadd.f32 %v1242, %v1339
        %v1356 = vadd.f32 %v1243, %v1340
        %v1357 = vadd.f32 %v1244, %v1341
        %v1358 = vadd.f32 %v1245, %v1342
        %v1359 = vadd.f32 %v1246, %v1343
        %v1360 = vadd.f32 %v1247, %v1344
        %v1361 = vadd.f32 %v1248, %v1345
        %v1362 = vadd.f32 %v1249, %v1346
        %v1363 = vadd.f32 %v1250, %v1347
        %v1364 = vadd.f32 %v1251, %v1348
        %v1365 = vld [vmem:[%s4] sm:$0x1]
        %v1367 = vlaneseq
        %v1368 = vshrl.u32 %v1367, 7
        %v1369 = vsub.s32 0, %v1368
        %v1370 = vrot.slane %v1365, %v1369
        %v1372 = vadd.f32 %v1349, %v1370
        %v1373 = vadd.f32 %v1350, %v1370
        %v1374 = vadd.f32 %v1351, %v1370
        %v1375 = vadd.f32 %v1352, %v1370
        %v1376 = vadd.f32 %v1353, %v1370
        %v1377 = vadd.f32 %v1354, %v1370
        %v1378 = vadd.f32 %v1355, %v1370
        %v1379 = vadd.f32 %v1356, %v1370
        %v1380 = vadd.f32 %v1357, %v1370
        %v1381 = vadd.f32 %v1358, %v1370
        %v1382 = vadd.f32 %v1359, %v1370
        %v1383 = vadd.f32 %v1360, %v1370
        %v1384 = vadd.f32 %v1361, %v1370
        %v1385 = vadd.f32 %v1362, %v1370
        %v1386 = vadd.f32 %v1363, %v1370
        %v1387 = vadd.f32 %v1364, %v1370
        %1388 = vst [vmem:[%s272] sm:$0xff] %v1372
        %1389 = vst [vmem:[%s272 + $0x8] sm:$0xff] %v1373
        %1390 = vst [vmem:[%s272 + $0x10] sm:$0xff] %v1374
        %1391 = vst [vmem:[%s272 + $0x18] sm:$0xff] %v1375
        %1392 = vst [vmem:[%s272 + $0x20] sm:$0xff] %v1376
        %1393 = vst [vmem:[%s272 + $0x28] sm:$0xff] %v1377
        %1394 = vst [vmem:[%s272 + $0x30] sm:$0xff] %v1378
        %1395 = vst [vmem:[%s272 + $0x38] sm:$0xff] %v1379
        %1396 = vst [vmem:[%s272 + $0x40] sm:$0xff] %v1380
        %1397 = vst [vmem:[%s272 + $0x48] sm:$0xff] %v1381
        %1398 = vst [vmem:[%s272 + $0x50] sm:$0xff] %v1382
        %1399 = vst [vmem:[%s272 + $0x58] sm:$0xff] %v1383
        %1400 = vst [vmem:[%s272 + $0x60] sm:$0xff] %v1384
        %1401 = vst [vmem:[%s272 + $0x68] sm:$0xff] %v1385
        %1402 = vst [vmem:[%s272 + $0x70] sm:$0xff] %v1386
        %1403 = vst [vmem:[%s272 + $0x78] sm:$0xff] %v1387
        %s1404 = sand.u32 %s141, 1
        %s1405 = scalar_lea.sflag [#allocation4], %s1404
        %s1406 = sand.u32 %s141, 1
        %s1407 = smul.addr %s1406, 128
        %s1408 = scalar_lea.vmem [#allocation8], %s1407
        // Predicated region
        $region53: #{tpu_custom_call.1} parent=39 // pred_check
          %p1409 = pneg %p151
        $region54: #{tpu_custom_call.1} parent=39 // pred_check_branch
          %1411 = sbr.rel (%p1409) target = $region56
        $region55: #{tpu_custom_call.1} parent=39 // pred_region
          %s1412 = smul.u32 8, %s23
          %s1414 = ssub.s32 2048, 2048
          %1415 = vsyncadd %s1405, %s1414
          %s1416 = smul.addr %s1412, 2
          %s1417 = smul.addr %s1416, 128
          %s1418 = scalar_lea.hbm %s5, %s1417
          %s1419 = sshll.u32 %s1408, 4
          %s1420 = int_to_ptr.vmem [resolvable:$true] %s1419
          %1425 = dma.vmem_to_hbm [thread:$0]  %s1420, 2048, %s1418, %s1405, 128, 128, 8
        $region56: #{tpu_custom_call.1} parent=39 // pred_fallthru
          _
      $region40: #{tpu_custom_call.1} parent=5 // pred_fallthru
        _
      %p1426 = scmp.le.s32.totalorder 2, %s18
      // Predicated region
      $region57: #{tpu_custom_call.1} parent=5 // pred_check
        %p1427 = pneg %p1426
      $region58: #{tpu_custom_call.1} parent=5 // pred_check_branch
        %1429 = sbr.rel (%p1427) target = $region60
      $region59: #{tpu_custom_call.1} parent=5 // pred_region
        %s1430 = ssub.s32 %s18, 2
        // Predicated region
        $region61: #{tpu_custom_call.1} parent=59 // pred_check
          %p1431 = pneg %p157
        $region62: #{tpu_custom_call.1} parent=59 // pred_check_branch
          %1433 = sbr.rel (%p1431) target = $region64
        $region63: #{tpu_custom_call.1} parent=59 // pred_region
          %s1434 = sand.u32 %s142, 1
          %s1435 = scalar_lea.sflag [#allocation4], %s1434
          %s1436 = sand.u32 %s142, 1
          %s1437 = smul.addr %s1436, 128
          %s1438 = scalar_lea.vmem [#allocation8], %s1437
          %1439 = dma.done %s1435, 2048
        $region64: #{tpu_custom_call.1} parent=59 // pred_fallthru
          _
      $region60: #{tpu_custom_call.1} parent=5 // pred_fallthru
        _
    $region6: #{tpu_custom_call.1} parent=1 // loop_footer
      %s22 = sadd.s32 1, %s18
    $region7: #{tpu_custom_call.1} parent=1 // loop_footer_branch
      %17 = sbr.rel target = $region3
    $region8: #{tpu_custom_call.1} parent=1 // loop_exit
      _
    %1440 = vsyncpa [#allocation3], 1
    %s1441 = scalar_lea.sflag [#allocation3], 1
    %1442 = vsyncpa %s1441, 1
    %1443 = vsyncpa [#allocation6], 1
    %1444 = vsyncpa [#allocation4], 1
    %s1445 = scalar_lea.sflag [#allocation4], 1
    %1446 = vsyncpa %s1445, 1

</llo_original>
